<compile_context>
chip_gen: v7x
topology: tpu7x:2x2x1
jax: 0.10.0
libtpu: 0.0.40
codegen_flags: <defaults>
</compile_context>

<pallas_src>
import functools

import jax
import jax.numpy as jnp
import numpy as np
from jax.experimental import pallas as pl
from jax.experimental.pallas import tpu as pltpu


def _vmem_limit():
    """Scoped-VMEM limit with headroom for the current TPU generation."""
    try:
        cap = int(pltpu.get_tpu_info().vmem_capacity_bytes)
    except Exception:
        return 48 * 1024 * 1024  # conservative: fits v5e/v6e/v7x
    return max(32 * 1024 * 1024, min(cap - 16 * 1024 * 1024, 100 * 1024 * 1024))


def _pick_group(num_heads, head_dim):
    """Smallest divisor G of num_heads with G*head_dim lane-aligned (mult of
    128); falls back to all heads in one group (width == hidden dim)."""
    for g in range(1, num_heads + 1):
        if num_heads % g == 0 and (g * head_dim) % 128 == 0:
            return g
    return num_heads


# --------------------------------------------------------------------------
# Kernel 1: multi-head self-attention + output projection + residual + n1.
# Grid: (batch, head_group, query_tile) — query tiles innermost so K/V are
# projected once per (batch, group) and reused across the whole query sweep.
# --------------------------------------------------------------------------
def _attn_core_kernel(xq_ref, xkv_ref, mask_ref, kpm_ref,
                      wq_ref, bq_ref, wkv_ref, bkv_ref,
                      wo_ref, bo_ref, g1_ref, be1_ref,
                      o_ref,
                      k_sc, v_sc, ho_sc,
                      *, num_groups, heads_per_group, head_dim, tq):
    g = pl.program_id(1)
    qi = pl.program_id(2)
    gw = heads_per_group * head_dim
    cdt = wq_ref.dtype                       # MXU operand dtype (f32 or bf16)

    # ---- K/V projection: once per (batch, head-group); one fused (H, 2*GW)
    # matmul, result split into the K and V scratches (lane-aligned halves).
    @pl.when(qi == 0)
    def _():
        xkv = xkv_ref[0].astype(cdt)                                   # (S, H)
        kv = jnp.dot(xkv, wkv_ref[0],
                     preferred_element_type=jnp.float32) + bkv_ref[0]  # (S, 2GW)
        k_sc[...] = kv[:, :gw].astype(cdt)
        v_sc[...] = kv[:, gw:].astype(cdt)

    # ---- Q projection for this query tile; 1/sqrt(hd) folded into wq/bq.
    xq = xq_ref[0]                                                     # (tq, H)
    q = jnp.dot(xq.astype(cdt), wq_ref[0],
                preferred_element_type=jnp.float32) + bq_ref[0]        # (tq, GW)

    # ---- Additive score bias combined once per step, shared by all heads.
    bias = mask_ref[...] + kpm_ref[0]                                  # (tq, S)

    # ---- Per-head attention within the group (head_dim may be < 128).
    outs = []
    for h in range(heads_per_group):
        c0 = h * head_dim
        qh = q[:, c0:c0 + head_dim].astype(cdt)                        # (tq, hd)
        kh = k_sc[:, c0:c0 + head_dim]                                 # (S, hd)
        vh = v_sc[:, c0:c0 + head_dim]                                 # (S, hd)
        s = jax.lax.dot_general(qh, kh, (((1,), (1,)), ((), ())),
                                preferred_element_type=jnp.float32)    # (tq, S)
        s = s + bias
        s = s - jnp.max(s, axis=-1, keepdims=True)
        p = jnp.exp(s)
        l = jnp.sum(p, axis=-1, keepdims=True)                         # (tq, 1)
        oh = jnp.dot(p.astype(cdt), vh,
                     preferred_element_type=jnp.float32)               # (tq, hd)
        # Deferred softmax normalization on the (tq, hd) result.  Exact divide
        # keeps the 1e-4 f32 tolerance; pl.reciprocal(l, approx=True) would
        # move it to the EUP slot at ~1e-3 rel error.
        outs.append(oh * (1.0 / l))
    group_out = (jnp.concatenate(outs, axis=-1)
                 if heads_per_group > 1 else outs[0]).astype(cdt)      # (tq, GW)

    row0 = pl.multiple_of(qi * tq, tq)

    # Stash this group's concat-head slab for the output projection done at
    # the last group (the last group's slab is used directly, so only groups
    # 0..num_groups-2 ever hit the scratch).
    @pl.when(g < num_groups - 1)
    def _():
        ho_sc[pl.ds(g, 1), pl.ds(row0, tq), :] = group_out[None]

    # ---- Last head-group: output projection (contraction width GW >= 128
    # per group), bias, residual and LayerNorm n1.
    @pl.when(g == num_groups - 1)
    def _():
        attn = jnp.dot(group_out, wo_ref[num_groups - 1],
                       preferred_element_type=jnp.float32)             # (tq, H)
        for j in range(num_groups - 1):
            attn = attn + jnp.dot(ho_sc[j, pl.ds(row0, tq), :], wo_ref[j],
                                  preferred_element_type=jnp.float32)
        attn = attn + bo_ref[...]

        y = xq.astype(jnp.float32) + attn
        mu = jnp.mean(y, axis=-1, keepdims=True)
        var = jnp.mean((y - mu) ** 2, axis=-1, keepdims=True)
        y = (y - mu) * jax.lax.rsqrt(var + 1e-5) * g1_ref[...] + be1_ref[...]
        o_ref[0] = y.astype(o_ref.dtype)


# --------------------------------------------------------------------------
# Kernel 2: n2 -> l1 -> leaky_relu(0.2) -> l2 -> residual -> n2, over
# (B*S, H) row tiles.  Keeps the (H, H) FFN weights out of kernel 1's VMEM
# and runs the FFN GEMMs with a large M dimension.
# --------------------------------------------------------------------------
def _ffn_kernel(y_ref, g2_ref, be2_ref, w1_ref, b1_ref, w2_ref, b2_ref, o_ref):
    y = y_ref[...].astype(jnp.float32)

    def ln(z):
        mu = jnp.mean(z, axis=-1, keepdims=True)
        var = jnp.mean((z - mu) ** 2, axis=-1, keepdims=True)
        return (z - mu) * jax.lax.rsqrt(var + 1e-5) * g2_ref[...] + be2_ref[...]

    z = ln(y)
    h1 = jnp.dot(z.astype(w1_ref.dtype), w1_ref[...],
                 preferred_element_type=jnp.float32) + b1_ref[...]
    h1 = jnp.where(h1 > 0, h1, 0.2 * h1)                 # leaky_relu(., 0.2)
    h2 = jnp.dot(h1.astype(w2_ref.dtype), w2_ref[...],
                 preferred_element_type=jnp.float32) + b2_ref[...]
    o_ref[...] = ln(y + h2).astype(o_ref.dtype)


def _ffn_block(y, g2, be2, w1, b1, w2, b2, *, compute_dtype, tm=None):
    rows, H = y.shape
    if tm is None:
        tm = min(rows, 256)
    assert rows % tm == 0 and (tm % 8 == 0 or tm == rows)
    const = lambda i: (0, 0)
    return pl.pallas_call(
        _ffn_kernel,
        out_shape=jax.ShapeDtypeStruct((rows, H), y.dtype),
        grid=(rows // tm,),
        in_specs=[
            pl.BlockSpec((tm, H), lambda i: (i, 0)),
            pl.BlockSpec((1, H), const), pl.BlockSpec((1, H), const),
            pl.BlockSpec((H, H), const), pl.BlockSpec((1, H), const),
            pl.BlockSpec((H, H), const), pl.BlockSpec((1, H), const),
        ],
        out_specs=pl.BlockSpec((tm, H), lambda i: (i, 0)),
        compiler_params=pltpu.CompilerParams(
            dimension_semantics=("parallel",),
            vmem_limit_bytes=_vmem_limit()),
    )(y, g2, be2, w1.astype(compute_dtype), b1, w2.astype(compute_dtype), b2)


def old_attn_layer(src, attn_mask, key_padding_mask, params, num_heads, *,
                   tq=None, compute_dtype=jnp.float32):
    """src: (B, S, H); attn_mask: (S, S) additive f32;
    key_padding_mask: (B, S) bool (True = ignore key).
    Weight convention: y = x @ w + b (projection weights are (H, H))."""
    B, S, H = src.shape
    assert H % num_heads == 0
    hd = H // num_heads
    G = _pick_group(num_heads, hd)
    NG = num_heads // G
    GW = G * hd
    if tq is None:
        tq = min(S, 256)
    assert S % tq == 0 and (tq % 8 == 0 or tq == S)
    nq = S // tq

    (wq, bq, wk, bk, wv, bv, wo, bo,
     g1, be1, g2, be2, w1, bl1, w2, bl2) = params

    cdt = compute_dtype
    f32 = jnp.float32
    scale = 1.0 / float(np.sqrt(hd))

    # Per-group weight slabs; 1/sqrt(hd) folded into the Q projection, K/V
    # projections fused into one (H, 2*GW) slab per group.
    wq_g = (wq.astype(f32) * scale).reshape(H, NG, GW).transpose(1, 0, 2).astype(cdt)
    bq_g = (bq.astype(f32) * scale).reshape(NG, 1, GW)
    wkv_g = jnp.concatenate(
        [wk.reshape(H, NG, GW), wv.reshape(H, NG, GW)], axis=-1
    ).transpose(1, 0, 2).astype(cdt)                                   # (NG, H, 2GW)
    bkv_g = jnp.concatenate(
        [bk.reshape(NG, 1, GW), bv.reshape(NG, 1, GW)], axis=-1)       # (NG, 1, 2GW)
    wo_g = wo.reshape(NG, GW, H).astype(cdt)                           # (NG, GW, H)

    # Tiny per-batch additive key-padding bias (B, 1, S) — no (B, S, S) mask.
    kpm_add = jnp.where(key_padding_mask, -1e30, 0.0).astype(f32)[:, None, :]
    attn_mask = attn_mask.astype(f32)

    kernel = functools.partial(_attn_core_kernel, num_groups=NG,
                               heads_per_group=G, head_dim=hd, tq=tq)
    grp_mat = lambda b, g, qi: (g, 0, 0)
    const2 = lambda b, g, qi: (0, 0)

    y1 = pl.pallas_call(
        kernel,
        out_shape=jax.ShapeDtypeStruct((B, S, H), src.dtype),
        grid=(B, NG, nq),
        in_specs=[
            pl.BlockSpec((1, tq, H), lambda b, g, qi: (b, qi, 0)),   # query rows
            pl.BlockSpec((1, S, H), lambda b, g, qi: (b, 0, 0)),     # key/value rows
            pl.BlockSpec((tq, S), lambda b, g, qi: (qi, 0)),         # attn_mask tile
            pl.BlockSpec((1, 1, S), lambda b, g, qi: (b, 0, 0)),     # key-padding bias
            pl.BlockSpec((1, H, GW), grp_mat),                       # wq (pre-scaled)
            pl.BlockSpec((1, 1, GW), grp_mat),                       # bq (pre-scaled)
            pl.BlockSpec((1, H, 2 * GW), grp_mat),                   # wkv (fused K|V)
            pl.BlockSpec((1, 1, 2 * GW), grp_mat),                   # bkv
            pl.BlockSpec((NG, GW, H), lambda b, g, qi: (0, 0, 0)),   # wo (all groups)
            pl.BlockSpec((1, H), const2),                            # bo
            pl.BlockSpec((1, H), const2),                            # gamma1
            pl.BlockSpec((1, H), const2),                            # beta1
        ],
        out_specs=pl.BlockSpec((1, tq, H), lambda b, g, qi: (b, qi, 0)),
        scratch_shapes=[
            pltpu.VMEM((S, GW), cdt),                    # K for current (b, group)
            pltpu.VMEM((S, GW), cdt),                    # V for current (b, group)
            pltpu.VMEM((max(NG - 1, 1), S, GW), cdt),    # earlier groups' head slabs
        ],
        compiler_params=pltpu.CompilerParams(
            dimension_semantics=("parallel", "arbitrary", "arbitrary"),
            vmem_limit_bytes=_vmem_limit()),
    )(src, src, attn_mask, kpm_add,
      wq_g, bq_g, wkv_g, bkv_g, wo_g, bo, g1, be1)

    y2 = _ffn_block(y1.reshape(B * S, H), g2, be2, w1, bl1, w2, bl2,
                    compute_dtype=cdt)
    return y2.reshape(B, S, H)


# --------------------------------------------------------------------------
# Pure-JAX reference (mirrors the PyTorch forward in eval mode).
# --------------------------------------------------------------------------
def _reference(src, attn_mask, key_padding_mask, params, num_heads):
    (wq, bq, wk, bk, wv, bv, wo, bo,
     g1, be1, g2, be2, w1, bl1, w2, bl2) = params
    B, S, H = src.shape
    hd = H // num_heads
    scale = 1.0 / np.sqrt(hd)
    kpm_add = jnp.where(key_padding_mask, -1e30, 0.0).astype(jnp.float32)
    mask = attn_mask[None, :, :] + kpm_add[:, None, :]

    q = src @ wq + bq
    k = src @ wk + bk
    v = src @ wv + bv
    qh = q.reshape(B, S, num_heads, hd).transpose(0, 2, 1, 3)
    kh = k.reshape(B, S, num_heads, hd).transpose(0, 2, 1, 3)
    vh = v.reshape(B, S, num_heads, hd).transpose(0, 2, 1, 3)
    s = jnp.einsum('bhqd,bhkd->bhqk', qh * scale, kh) + mask[:, None, :, :]
    p = jax.nn.softmax(s, axis=-1)
    o = jnp.einsum('bhqk,bhkd->bhqd', p, vh).transpose(0, 2, 1, 3).reshape(B, S, H)
    attn = o @ wo + bo

    def ln(z, g, b):
        mu = z.mean(-1, keepdims=True)
        var = ((z - mu) ** 2).mean(-1, keepdims=True)
        return (z - mu) / jnp.sqrt(var + 1e-5) * g + b

    y = ln(src + attn, g1, be1)
    z = ln(y, g2, be2)
    h1 = z @ w1 + bl1
    h1 = jnp.where(h1 > 0, h1, 0.2 * h1)
    h2 = h1 @ w2 + bl2
    return ln(y + h2, g2, be2)


if __name__ == "__main__":
    base_key = jax.random.PRNGKey(0)

    def make_params(key, H):
        ks = jax.random.split(key, 12)
        w = lambda k: jax.random.normal(k, (H, H), jnp.float32) * 0.1
        b = lambda k: jax.random.normal(k, (1, H), jnp.float32) * 0.05
        return (
            w(ks[0]), b(ks[1]),            # q proj
            w(ks[2]), b(ks[3]),            # k proj
            w(ks[4]), b(ks[5]),            # v proj
            w(ks[6]), b(ks[7]),            # out proj
            jnp.ones((1, H), jnp.float32), jnp.zeros((1, H), jnp.float32),   # n1
            jnp.ones((1, H), jnp.float32) * 1.1,
            jnp.zeros((1, H), jnp.float32) + 0.01,                           # n2
            w(ks[8]), b(ks[9]),            # l1
            w(ks[10]), b(ks[11]),          # l2
        )

    def run_case(case_id, B, S, H, NH, tq=None,
                 compute_dtype=jnp.float32, rtol=1e-4, atol=1e-4):
        key = jax.random.fold_in(base_key, case_id)
        kp, kx, km = jax.random.split(key, 3)
        params = make_params(kp, H)
        src = jax.random.normal(kx, (B, S, H), jnp.float32)
        attn_mask = jax.random.normal(km, (S, S), jnp.float32) * 0.1
        key_padding_mask = jnp.zeros((B, S), jnp.bool_).at[-1, -2:].set(True)

        out = old_attn_layer(src, attn_mask, key_padding_mask, params, NH,
                             tq=tq, compute_dtype=compute_dtype)
        out = jax.block_until_ready(out)
        ref = _reference(src, attn_mask, key_padding_mask, params, NH)
        np.testing.assert_allclose(np.asarray(out), np.asarray(ref),
                                   rtol=rtol, atol=atol)

    # 1) Strict f32 check: hd=32 -> one head group of 4 (GW = H = 128), nq = 1.
    run_case(0, B=2, S=16, H=128, NH=4)
    # 2) Multi-group + multi-query-tile path: 8 heads -> 2 groups of 4
    #    (GW = 128), 2 query tiles reusing the per-group K/V scratches.
    run_case(1, B=2, S=32, H=256, NH=8, tq=16)
    # 3) bf16 MXU operands (v6e/v7x recommendation); softmax / LayerNorm stay
    #    f32.  Loose tolerance vs. the f32 reference (bf16 rounding).
    run_case(0, B=2, S=16, H=128, NH=4, compute_dtype=jnp.bfloat16,
             rtol=2e-1, atol=2e-1)

    print("KERNEL_OK")
</pallas_src>

<mosaic_0001>
module attributes {stable_mosaic.version = 11 : i64} {
  func.func @_attn_core_kernel(%arg0: i32, %arg1: i32, %arg2: i32, %arg3: memref<1x16x128xf32, #tpu.memory_space<vmem>>, %arg4: memref<1x16x128xf32, #tpu.memory_space<vmem>>, %arg5: memref<16x16xf32, #tpu.memory_space<vmem>>, %arg6: memref<1x1x16xf32, #tpu.memory_space<vmem>>, %arg7: memref<1x128x128xf32, #tpu.memory_space<vmem>>, %arg8: memref<1x1x128xf32, #tpu.memory_space<vmem>>, %arg9: memref<1x128x256xf32, #tpu.memory_space<vmem>>, %arg10: memref<1x1x256xf32, #tpu.memory_space<vmem>>, %arg11: memref<1x128x128xf32, #tpu.memory_space<vmem>>, %arg12: memref<1x128xf32, #tpu.memory_space<vmem>>, %arg13: memref<1x128xf32, #tpu.memory_space<vmem>>, %arg14: memref<1x128xf32, #tpu.memory_space<vmem>>, %arg15: memref<1x16x128xf32, #tpu.memory_space<vmem>>, %arg16: memref<16x128xf32, #tpu.memory_space<vmem>>, %arg17: memref<16x128xf32, #tpu.memory_space<vmem>>, %arg18: memref<1x16x128xf32, #tpu.memory_space<vmem>>) attributes {dimension_semantics = [#tpu.dimension_semantics<parallel>, #tpu.dimension_semantics<arbitrary>, #tpu.dimension_semantics<arbitrary>], iteration_bounds = array<i64: 2, 1, 1>, scalar_prefetch = 0 : i64, scratch_operands = 3 : i64, tpu.core_type = #tpu.core_type<tc>, window_params = [{transform_indices = @transform_0, window_bounds = array<i64: 1, 16, 128>}, {transform_indices = @transform_1, window_bounds = array<i64: 1, 16, 128>}, {transform_indices = @transform_2, window_bounds = array<i64: 16, 16>}, {transform_indices = @transform_3, window_bounds = array<i64: 1, 1, 16>}, {transform_indices = @transform_4, window_bounds = array<i64: 1, 128, 128>}, {transform_indices = @transform_5, window_bounds = array<i64: 1, 1, 128>}, {transform_indices = @transform_6, window_bounds = array<i64: 1, 128, 256>}, {transform_indices = @transform_7, window_bounds = array<i64: 1, 1, 256>}, {pipeline_mode = #tpu.pipeline_mode<synchronous>, transform_indices = @transform_8, window_bounds = array<i64: 1, 128, 128>}, {pipeline_mode = #tpu.pipeline_mode<synchronous>, transform_indices = @transform_9, window_bounds = array<i64: 1, 128>}, {pipeline_mode = #tpu.pipeline_mode<synchronous>, transform_indices = @transform_10, window_bounds = array<i64: 1, 128>}, {pipeline_mode = #tpu.pipeline_mode<synchronous>, transform_indices = @transform_11, window_bounds = array<i64: 1, 128>}, {transform_indices = @transform_12, window_bounds = array<i64: 1, 16, 128>}]} {
    %c0_i32 = arith.constant 0 : i32
    %0 = arith.cmpi eq, %arg2, %c0_i32 : i32
    %1 = arith.extui %0 : i1 to i32
    %c0_i32_0 = arith.constant 0 : i32
    %2 = arith.cmpi ne, %1, %c0_i32_0 : i32
    scf.if %2 {
      %c0_51 = arith.constant 0 : index
      %c0_52 = arith.constant 0 : index
      %c0_53 = arith.constant 0 : index
      %94 = vector.load %arg4[%c0_51, %c0_52, %c0_53] : memref<1x16x128xf32, #tpu.memory_space<vmem>>, vector<1x16x128xf32>
      %95 = vector.shape_cast %94 : vector<1x16x128xf32> to vector<16x128xf32>
      %c0_54 = arith.constant 0 : index
      %c0_55 = arith.constant 0 : index
      %c0_56 = arith.constant 0 : index
      %96 = vector.load %arg9[%c0_54, %c0_55, %c0_56] : memref<1x128x256xf32, #tpu.memory_space<vmem>>, vector<1x128x256xf32>
      %97 = vector.shape_cast %96 : vector<1x128x256xf32> to vector<128x256xf32>
      %cst_57 = arith.constant dense<0.000000e+00> : vector<16x256xf32>
      %98 = tpu.matmul %95, %97, %cst_57 {dimension_numbers = #tpu.dot_dimension_numbers<[1], [0], [0], [1], [0, 0, 1, 1], [], []>} : vector<16x128xf32>, vector<128x256xf32>, vector<16x256xf32> -> vector<16x256xf32>
      %c0_58 = arith.constant 0 : index
      %c0_59 = arith.constant 0 : index
      %c0_60 = arith.constant 0 : index
      %99 = vector.load %arg10[%c0_58, %c0_59, %c0_60] : memref<1x1x256xf32, #tpu.memory_space<vmem>>, vector<1x1x256xf32>
      %100 = vector.shape_cast %99 : vector<1x1x256xf32> to vector<1x256xf32>
      %101 = vector.broadcast %100 : vector<1x256xf32> to vector<16x256xf32>
      %102 = arith.addf %98, %101 : vector<16x256xf32>
      %103 = vector.extract_strided_slice %102 {offsets = [0, 0], sizes = [16, 128], strides = [1, 1]} : vector<16x256xf32> to vector<16x128xf32>
      %c0_61 = arith.constant 0 : index
      %c0_62 = arith.constant 0 : index
      %104 = vector.load %arg16[%c0_61, %c0_62] : memref<16x128xf32, #tpu.memory_space<vmem>>, vector<16x128xf32>
      tpu.vector_store %arg16[%c0_61, %c0_62], %103 {strides = array<i32>} : memref<16x128xf32, #tpu.memory_space<vmem>>, vector<16x128xf32>,
      %105 = vector.extract_strided_slice %102 {offsets = [0, 128], sizes = [16, 128], strides = [1, 1]} : vector<16x256xf32> to vector<16x128xf32>
      %c0_63 = arith.constant 0 : index
      %c0_64 = arith.constant 0 : index
      %106 = vector.load %arg17[%c0_63, %c0_64] : memref<16x128xf32, #tpu.memory_space<vmem>>, vector<16x128xf32>
      tpu.vector_store %arg17[%c0_63, %c0_64], %105 {strides = array<i32>} : memref<16x128xf32, #tpu.memory_space<vmem>>, vector<16x128xf32>,
    } else {
    }
    %c0 = arith.constant 0 : index
    %c0_1 = arith.constant 0 : index
    %c0_2 = arith.constant 0 : index
    %3 = vector.load %arg3[%c0, %c0_1, %c0_2] : memref<1x16x128xf32, #tpu.memory_space<vmem>>, vector<1x16x128xf32>
    %4 = vector.shape_cast %3 : vector<1x16x128xf32> to vector<16x128xf32>
    %c0_3 = arith.constant 0 : index
    %c0_4 = arith.constant 0 : index
    %c0_5 = arith.constant 0 : index
    %5 = vector.load %arg7[%c0_3, %c0_4, %c0_5] : memref<1x128x128xf32, #tpu.memory_space<vmem>>, vector<1x128x128xf32>
    %6 = vector.shape_cast %5 : vector<1x128x128xf32> to vector<128x128xf32>
    %cst = arith.constant dense<0.000000e+00> : vector<16x128xf32>
    %7 = tpu.matmul %4, %6, %cst {dimension_numbers = #tpu.dot_dimension_numbers<[1], [0], [0], [1], [0, 0, 1, 1], [], []>} : vector<16x128xf32>, vector<128x128xf32>, vector<16x128xf32> -> vector<16x128xf32>
    %c0_6 = arith.constant 0 : index
    %c0_7 = arith.constant 0 : index
    %c0_8 = arith.constant 0 : index
    %8 = vector.load %arg8[%c0_6, %c0_7, %c0_8] : memref<1x1x128xf32, #tpu.memory_space<vmem>>, vector<1x1x128xf32>
    %9 = vector.shape_cast %8 : vector<1x1x128xf32> to vector<1x128xf32>
    %10 = vector.broadcast %9 : vector<1x128xf32> to vector<16x128xf32>
    %11 = arith.addf %7, %10 : vector<16x128xf32>
    %c0_9 = arith.constant 0 : index
    %c0_10 = arith.constant 0 : index
    %12 = vector.load %arg5[%c0_9, %c0_10] : memref<16x16xf32, #tpu.memory_space<vmem>>, vector<16x16xf32>
    %c0_11 = arith.constant 0 : index
    %c0_12 = arith.constant 0 : index
    %c0_13 = arith.constant 0 : index
    %13 = vector.load %arg6[%c0_11, %c0_12, %c0_13] : memref<1x1x16xf32, #tpu.memory_space<vmem>>, vector<1x1x16xf32>
    %14 = vector.shape_cast %13 : vector<1x1x16xf32> to vector<1x16xf32>
    %15 = vector.broadcast %14 : vector<1x16xf32> to vector<16x16xf32>
    %16 = arith.addf %12, %15 : vector<16x16xf32>
    %17 = vector.extract_strided_slice %11 {offsets = [0, 0], sizes = [16, 32], strides = [1, 1]} : vector<16x128xf32> to vector<16x32xf32>
    %c0_14 = arith.constant 0 : index
    %c0_15 = arith.constant 0 : index
    %18 = vector.load %arg16[%c0_14, %c0_15] : memref<16x128xf32, #tpu.memory_space<vmem>>, vector<16x32xf32>
    %c0_16 = arith.constant 0 : index
    %c0_17 = arith.constant 0 : index
    %19 = vector.load %arg17[%c0_16, %c0_17] : memref<16x128xf32, #tpu.memory_space<vmem>>, vector<16x32xf32>
    %cst_18 = arith.constant dense<0.000000e+00> : vector<16x16xf32>
    %20 = tpu.matmul %17, %18, %cst_18 {dimension_numbers = #tpu.dot_dimension_numbers<[1], [1], [0], [0], [0, 0, 1, 0], [], []>} : vector<16x32xf32>, vector<16x32xf32>, vector<16x16xf32> -> vector<16x16xf32>
    %21 = arith.addf %20, %16 : vector<16x16xf32>
    %cst_19 = arith.constant dense<0xFF800000> : vector<16xf32>
    %22 = vector.multi_reduction <maximumf>, %21, %cst_19 [1] : vector<16x16xf32> to vector<16xf32>
    %23 = vector.shape_cast %22 : vector<16xf32> to vector<16x1xf32>
    %24 = vector.broadcast %23 : vector<16x1xf32> to vector<16x16xf32>
    %25 = arith.subf %21, %24 : vector<16x16xf32>
    %26 = math.exp %25 : vector<16x16xf32>
    %cst_20 = arith.constant dense<0.000000e+00> : vector<16xf32>
    %27 = vector.multi_reduction <add>, %26, %cst_20 [1] : vector<16x16xf32> to vector<16xf32>
    %28 = vector.shape_cast %27 : vector<16xf32> to vector<16x1xf32>
    %cst_21 = arith.constant dense<0.000000e+00> : vector<16x32xf32>
    %29 = tpu.matmul %26, %19, %cst_21 {dimension_numbers = #tpu.dot_dimension_numbers<[1], [0], [0], [1], [0, 0, 1, 1], [], []>} : vector<16x16xf32>, vector<16x32xf32>, vector<16x32xf32> -> vector<16x32xf32>
    %cst_22 = arith.constant 1.000000e+00 : f32
    %30 = vector.broadcast %cst_22 : f32 to vector<16x1xf32>
    %31 = arith.divf %30, %28 : vector<16x1xf32>
    %32 = vector.broadcast %31 : vector<16x1xf32> to vector<16x32xf32>
    %33 = arith.mulf %29, %32 : vector<16x32xf32>
    %34 = vector.extract_strided_slice %11 {offsets = [0, 32], sizes = [16, 32], strides = [1, 1]} : vector<16x128xf32> to vector<16x32xf32>
    %c0_23 = arith.constant 0 : index
    %c32 = arith.constant 32 : index
    %35 = vector.load %arg16[%c0_23, %c32] : memref<16x128xf32, #tpu.memory_space<vmem>>, vector<16x32xf32>
    %c0_24 = arith.constant 0 : index
    %c32_25 = arith.constant 32 : index
    %36 = vector.load %arg17[%c0_24, %c32_25] : memref<16x128xf32, #tpu.memory_space<vmem>>, vector<16x32xf32>
    %cst_26 = arith.constant dense<0.000000e+00> : vector<16x16xf32>
    %37 = tpu.matmul %34, %35, %cst_26 {dimension_numbers = #tpu.dot_dimension_numbers<[1], [1], [0], [0], [0, 0, 1, 0], [], []>} : vector<16x32xf32>, vector<16x32xf32>, vector<16x16xf32> -> vector<16x16xf32>
    %38 = arith.addf %37, %16 : vector<16x16xf32>
    %cst_27 = arith.constant dense<0xFF800000> : vector<16xf32>
    %39 = vector.multi_reduction <maximumf>, %38, %cst_27 [1] : vector<16x16xf32> to vector<16xf32>
    %40 = vector.shape_cast %39 : vector<16xf32> to vector<16x1xf32>
    %41 = vector.broadcast %40 : vector<16x1xf32> to vector<16x16xf32>
    %42 = arith.subf %38, %41 : vector<16x16xf32>
    %43 = math.exp %42 : vector<16x16xf32>
    %cst_28 = arith.constant dense<0.000000e+00> : vector<16xf32>
    %44 = vector.multi_reduction <add>, %43, %cst_28 [1] : vector<16x16xf32> to vector<16xf32>
    %45 = vector.shape_cast %44 : vector<16xf32> to vector<16x1xf32>
    %cst_29 = arith.constant dense<0.000000e+00> : vector<16x32xf32>
    %46 = tpu.matmul %43, %36, %cst_29 {dimension_numbers = #tpu.dot_dimension_numbers<[1], [0], [0], [1], [0, 0, 1, 1], [], []>} : vector<16x16xf32>, vector<16x32xf32>, vector<16x32xf32> -> vector<16x32xf32>
    %cst_30 = arith.constant 1.000000e+00 : f32
    %47 = vector.broadcast %cst_30 : f32 to vector<16x1xf32>
    %48 = arith.divf %47, %45 : vector<16x1xf32>
    %49 = vector.broadcast %48 : vector<16x1xf32> to vector<16x32xf32>
    %50 = arith.mulf %46, %49 : vector<16x32xf32>
    %51 = vector.extract_strided_slice %11 {offsets = [0, 64], sizes = [16, 32], strides = [1, 1]} : vector<16x128xf32> to vector<16x32xf32>
    %c0_31 = arith.constant 0 : index
    %c64 = arith.constant 64 : index
    %52 = vector.load %arg16[%c0_31, %c64] : memref<16x128xf32, #tpu.memory_space<vmem>>, vector<16x32xf32>
    %c0_32 = arith.constant 0 : index
    %c64_33 = arith.constant 64 : index
    %53 = vector.load %arg17[%c0_32, %c64_33] : memref<16x128xf32, #tpu.memory_space<vmem>>, vector<16x32xf32>
    %cst_34 = arith.constant dense<0.000000e+00> : vector<16x16xf32>
    %54 = tpu.matmul %51, %52, %cst_34 {dimension_numbers = #tpu.dot_dimension_numbers<[1], [1], [0], [0], [0, 0, 1, 0], [], []>} : vector<16x32xf32>, vector<16x32xf32>, vector<16x16xf32> -> vector<16x16xf32>
    %55 = arith.addf %54, %16 : vector<16x16xf32>
    %cst_35 = arith.constant dense<0xFF800000> : vector<16xf32>
    %56 = vector.multi_reduction <maximumf>, %55, %cst_35 [1] : vector<16x16xf32> to vector<16xf32>
    %57 = vector.shape_cast %56 : vector<16xf32> to vector<16x1xf32>
    %58 = vector.broadcast %57 : vector<16x1xf32> to vector<16x16xf32>
    %59 = arith.subf %55, %58 : vector<16x16xf32>
    %60 = math.exp %59 : vector<16x16xf32>
    %cst_36 = arith.constant dense<0.000000e+00> : vector<16xf32>
    %61 = vector.multi_reduction <add>, %60, %cst_36 [1] : vector<16x16xf32> to vector<16xf32>
    %62 = vector.shape_cast %61 : vector<16xf32> to vector<16x1xf32>
    %cst_37 = arith.constant dense<0.000000e+00> : vector<16x32xf32>
    %63 = tpu.matmul %60, %53, %cst_37 {dimension_numbers = #tpu.dot_dimension_numbers<[1], [0], [0], [1], [0, 0, 1, 1], [], []>} : vector<16x16xf32>, vector<16x32xf32>, vector<16x32xf32> -> vector<16x32xf32>
    %cst_38 = arith.constant 1.000000e+00 : f32
    %64 = vector.broadcast %cst_38 : f32 to vector<16x1xf32>
    %65 = arith.divf %64, %62 : vector<16x1xf32>
    %66 = vector.broadcast %65 : vector<16x1xf32> to vector<16x32xf32>
    %67 = arith.mulf %63, %66 : vector<16x32xf32>
    %68 = vector.extract_strided_slice %11 {offsets = [0, 96], sizes = [16, 32], strides = [1, 1]} : vector<16x128xf32> to vector<16x32xf32>
    %c0_39 = arith.constant 0 : index
    %c96 = arith.constant 96 : index
    %69 = vector.load %arg16[%c0_39, %c96] : memref<16x128xf32, #tpu.memory_space<vmem>>, vector<16x32xf32>
    %c0_40 = arith.constant 0 : index
    %c96_41 = arith.constant 96 : index
    %70 = vector.load %arg17[%c0_40, %c96_41] : memref<16x128xf32, #tpu.memory_space<vmem>>, vector<16x32xf32>
    %cst_42 = arith.constant dense<0.000000e+00> : vector<16x16xf32>
    %71 = tpu.matmul %68, %69, %cst_42 {dimension_numbers = #tpu.dot_dimension_numbers<[1], [1], [0], [0], [0, 0, 1, 0], [], []>} : vector<16x32xf32>, vector<16x32xf32>, vector<16x16xf32> -> vector<16x16xf32>
    %72 = arith.addf %71, %16 : vector<16x16xf32>
    %cst_43 = arith.constant dense<0xFF800000> : vector<16xf32>
    %73 = vector.multi_reduction <maximumf>, %72, %cst_43 [1] : vector<16x16xf32> to vector<16xf32>
    %74 = vector.shape_cast %73 : vector<16xf32> to vector<16x1xf32>
    %75 = vector.broadcast %74 : vector<16x1xf32> to vector<16x16xf32>
    %76 = arith.subf %72, %75 : vector<16x16xf32>
    %77 = math.exp %76 : vector<16x16xf32>
    %cst_44 = arith.constant dense<0.000000e+00> : vector<16xf32>
    %78 = vector.multi_reduction <add>, %77, %cst_44 [1] : vector<16x16xf32> to vector<16xf32>
    %79 = vector.shape_cast %78 : vector<16xf32> to vector<16x1xf32>
    %cst_45 = arith.constant dense<0.000000e+00> : vector<16x32xf32>
    %80 = tpu.matmul %77, %70, %cst_45 {dimension_numbers = #tpu.dot_dimension_numbers<[1], [0], [0], [1], [0, 0, 1, 1], [], []>} : vector<16x16xf32>, vector<16x32xf32>, vector<16x32xf32> -> vector<16x32xf32>
    %cst_46 = arith.constant 1.000000e+00 : f32
    %81 = vector.broadcast %cst_46 : f32 to vector<16x1xf32>
    %82 = arith.divf %81, %79 : vector<16x1xf32>
    %83 = vector.broadcast %82 : vector<16x1xf32> to vector<16x32xf32>
    %84 = arith.mulf %80, %83 : vector<16x32xf32>
    %85 = tpu.concatenate %33, %50, %67, %84 in 1 : vector<16x32xf32>, vector<16x32xf32>, vector<16x32xf32>, vector<16x32xf32> -> vector<16x128xf32>
    %c16_i32 = arith.constant 16 : i32
    %86 = arith.muli %arg2, %c16_i32 : i32
    %87 = tpu.assume_multiple %86, 16 : i32
    %c0_i32_47 = arith.constant 0 : i32
    %88 = arith.cmpi slt, %arg1, %c0_i32_47 : i32
    %89 = arith.extui %88 : i1 to i32
    %c0_i32_48 = arith.constant 0 : i32
    %90 = arith.cmpi ne, %89, %c0_i32_48 : i32
    scf.if %90 {
      %94 = vector.shape_cast %85 : vector<16x128xf32> to vector<1x16x128xf32>
      %95 = arith.index_cast %arg1 : i32 to index
      %96 = arith.index_cast %87 : i32 to index
      %c0_51 = arith.constant 0 : index
      %97 = vector.load %arg18[%95, %96, %c0_51] : memref<1x16x128xf32, #tpu.memory_space<vmem>>, vector<1x16x128xf32>
      tpu.vector_store %arg18[%95, %96, %c0_51], %94 {strides = array<i32>} : memref<1x16x128xf32, #tpu.memory_space<vmem>>, vector<1x16x128xf32>,
    } else {
    }
    %c0_i32_49 = arith.constant 0 : i32
    %91 = arith.cmpi eq, %arg1, %c0_i32_49 : i32
    %92 = arith.extui %91 : i1 to i32
    %c0_i32_50 = arith.constant 0 : i32
    %93 = arith.cmpi ne, %92, %c0_i32_50 : i32
    scf.if %93 {
      %c0_51 = arith.constant 0 : index
      %c0_52 = arith.constant 0 : index
      %c0_53 = arith.constant 0 : index
      %94 = vector.load %arg11[%c0_51, %c0_52, %c0_53] : memref<1x128x128xf32, #tpu.memory_space<vmem>>, vector<1x128x128xf32>
      %95 = vector.shape_cast %94 : vector<1x128x128xf32> to vector<128x128xf32>
      %cst_54 = arith.constant dense<0.000000e+00> : vector<16x128xf32>
      %96 = tpu.matmul %85, %95, %cst_54 {dimension_numbers = #tpu.dot_dimension_numbers<[1], [0], [0], [1], [0, 0, 1, 1], [], []>} : vector<16x128xf32>, vector<128x128xf32>, vector<16x128xf32> -> vector<16x128xf32>
      %c0_55 = arith.constant 0 : index
      %c0_56 = arith.constant 0 : index
      %97 = vector.load %arg12[%c0_55, %c0_56] : memref<1x128xf32, #tpu.memory_space<vmem>>, vector<1x128xf32>
      %98 = vector.broadcast %97 : vector<1x128xf32> to vector<16x128xf32>
      %99 = arith.addf %96, %98 : vector<16x128xf32>
      %100 = arith.addf %4, %99 : vector<16x128xf32>
      %cst_57 = arith.constant dense<0.000000e+00> : vector<16xf32>
      %101 = vector.multi_reduction <add>, %100, %cst_57 [1] : vector<16x128xf32> to vector<16xf32>
      %102 = vector.shape_cast %101 : vector<16xf32> to vector<16x1xf32>
      %cst_58 = arith.constant 1.280000e+02 : f32
      %103 = vector.broadcast %cst_58 : f32 to vector<16x1xf32>
      %104 = arith.divf %102, %103 : vector<16x1xf32>
      %105 = vector.broadcast %104 : vector<16x1xf32> to vector<16x128xf32>
      %106 = arith.subf %100, %105 : vector<16x128xf32>
      %107 = arith.mulf %106, %106 : vector<16x128xf32>
      %cst_59 = arith.constant dense<0.000000e+00> : vector<16xf32>
      %108 = vector.multi_reduction <add>, %107, %cst_59 [1] : vector<16x128xf32> to vector<16xf32>
      %109 = vector.shape_cast %108 : vector<16xf32> to vector<16x1xf32>
      %cst_60 = arith.constant 1.280000e+02 : f32
      %110 = vector.broadcast %cst_60 : f32 to vector<16x1xf32>
      %111 = arith.divf %109, %110 : vector<16x1xf32>
      %112 = vector.broadcast %104 : vector<16x1xf32> to vector<16x128xf32>
      %113 = arith.subf %100, %112 : vector<16x128xf32>
      %cst_61 = arith.constant 9.99999974E-6 : f32
      %114 = vector.broadcast %cst_61 : f32 to vector<16x1xf32>
      %115 = arith.addf %111, %114 : vector<16x1xf32>
      %116 = math.rsqrt %115 : vector<16x1xf32>
      %117 = vector.broadcast %116 : vector<16x1xf32> to vector<16x128xf32>
      %118 = arith.mulf %113, %117 : vector<16x128xf32>
      %c0_62 = arith.constant 0 : index
      %c0_63 = arith.constant 0 : index
      %119 = vector.load %arg13[%c0_62, %c0_63] : memref<1x128xf32, #tpu.memory_space<vmem>>, vector<1x128xf32>
      %120 = vector.broadcast %119 : vector<1x128xf32> to vector<16x128xf32>
      %121 = arith.mulf %118, %120 : vector<16x128xf32>
      %c0_64 = arith.constant 0 : index
      %c0_65 = arith.constant 0 : index
      %122 = vector.load %arg14[%c0_64, %c0_65] : memref<1x128xf32, #tpu.memory_space<vmem>>, vector<1x128xf32>
      %123 = vector.broadcast %122 : vector<1x128xf32> to vector<16x128xf32>
      %124 = arith.addf %121, %123 : vector<16x128xf32>
      %c0_66 = arith.constant 0 : index
      %c0_67 = arith.constant 0 : index
      %c0_68 = arith.constant 0 : index
      %125 = vector.load %arg15[%c0_66, %c0_67, %c0_68] : memref<1x16x128xf32, #tpu.memory_space<vmem>>, vector<1x16x128xf32>
      %126 = vector.shape_cast %125 : vector<1x16x128xf32> to vector<16x128xf32>
      %127 = vector.shape_cast %124 : vector<16x128xf32> to vector<1x16x128xf32>
      tpu.vector_store %arg15[%c0_66, %c0_67, %c0_68], %127 {strides = array<i32>} : memref<1x16x128xf32, #tpu.memory_space<vmem>>, vector<1x16x128xf32>,
    } else {
    }
    return
  }
  func.func @transform_0(%arg0: i32, %arg1: i32, %arg2: i32) -> (i32, i32, i32) {
    %c0_i32 = arith.constant 0 : i32
    %c0_i32_0 = arith.constant 0 : i32
    return %arg0, %arg2, %c0_i32 : i32, i32, i32
  }
  func.func @transform_1(%arg0: i32, %arg1: i32, %arg2: i32) -> (i32, i32, i32) {
    %c0_i32 = arith.constant 0 : i32
    %c0_i32_0 = arith.constant 0 : i32
    %c0_i32_1 = arith.constant 0 : i32
    return %arg0, %c0_i32, %c0_i32_0 : i32, i32, i32
  }
  func.func @transform_2(%arg0: i32, %arg1: i32, %arg2: i32) -> (i32, i32) {
    %c0_i32 = arith.constant 0 : i32
    %c0_i32_0 = arith.constant 0 : i32
    return %arg2, %c0_i32 : i32, i32
  }
  func.func @transform_3(%arg0: i32, %arg1: i32, %arg2: i32) -> (i32, i32, i32) {
    %c0_i32 = arith.constant 0 : i32
    %c0_i32_0 = arith.constant 0 : i32
    %c0_i32_1 = arith.constant 0 : i32
    return %arg0, %c0_i32, %c0_i32_0 : i32, i32, i32
  }
  func.func @transform_4(%arg0: i32, %arg1: i32, %arg2: i32) -> (i32, i32, i32) {
    %c0_i32 = arith.constant 0 : i32
    %c0_i32_0 = arith.constant 0 : i32
    %c0_i32_1 = arith.constant 0 : i32
    return %arg1, %c0_i32, %c0_i32_0 : i32, i32, i32
  }
  func.func @transform_5(%arg0: i32, %arg1: i32, %arg2: i32) -> (i32, i32, i32) {
    %c0_i32 = arith.constant 0 : i32
    %c0_i32_0 = arith.constant 0 : i32
    %c0_i32_1 = arith.constant 0 : i32
    return %arg1, %c0_i32, %c0_i32_0 : i32, i32, i32
  }
  func.func @transform_6(%arg0: i32, %arg1: i32, %arg2: i32) -> (i32, i32, i32) {
    %c0_i32 = arith.constant 0 : i32
    %c0_i32_0 = arith.constant 0 : i32
    %c0_i32_1 = arith.constant 0 : i32
    return %arg1, %c0_i32, %c0_i32_0 : i32, i32, i32
  }
  func.func @transform_7(%arg0: i32, %arg1: i32, %arg2: i32) -> (i32, i32, i32) {
    %c0_i32 = arith.constant 0 : i32
    %c0_i32_0 = arith.constant 0 : i32
    %c0_i32_1 = arith.constant 0 : i32
    return %arg1, %c0_i32, %c0_i32_0 : i32, i32, i32
  }
  func.func @transform_8(%arg0: i32, %arg1: i32, %arg2: i32) -> (i32, i32, i32) {
    %c0_i32 = arith.constant 0 : i32
    %c0_i32_0 = arith.constant 0 : i32
    %c0_i32_1 = arith.constant 0 : i32
    %c0_i32_2 = arith.constant 0 : i32
    return %c0_i32, %c0_i32_0, %c0_i32_1 : i32, i32, i32
  }
  func.func @transform_9(%arg0: i32, %arg1: i32, %arg2: i32) -> (i32, i32) {
    %c0_i32 = arith.constant 0 : i32
    %c0_i32_0 = arith.constant 0 : i32
    %c0_i32_1 = arith.constant 0 : i32
    return %c0_i32, %c0_i32_0 : i32, i32
  }
  func.func @transform_10(%arg0: i32, %arg1: i32, %arg2: i32) -> (i32, i32) {
    %c0_i32 = arith.constant 0 : i32
    %c0_i32_0 = arith.constant 0 : i32
    %c0_i32_1 = arith.constant 0 : i32
    return %c0_i32, %c0_i32_0 : i32, i32
  }
  func.func @transform_11(%arg0: i32, %arg1: i32, %arg2: i32) -> (i32, i32) {
    %c0_i32 = arith.constant 0 : i32
    %c0_i32_0 = arith.constant 0 : i32
    %c0_i32_1 = arith.constant 0 : i32
    return %c0_i32, %c0_i32_0 : i32, i32
  }
  func.func @transform_12(%arg0: i32, %arg1: i32, %arg2: i32) -> (i32, i32, i32) {
    %c0_i32 = arith.constant 0 : i32
    %c0_i32_0 = arith.constant 0 : i32
    return %arg0, %arg2, %c0_i32 : i32, i32, i32
  }
}

</mosaic_0001>

<llo_original>
// kernel: tpu_custom_call.1
$region0: #{tpu_custom_call.1}
  #allocation0 [shape = 'u32[]', space=smem, size = 0x4, offset = 0x4, fixed_abs, tag = 'smem constant byte address 0x4 - core index']
  #allocation1 [shape = 'u32[144,128]{1,0:T(1,128)}', space=vmem, size = 0x12000, scoped, tag = 'internal scratch']
  #allocation2 [shape = 'f32[16,128]{1,0:T(8,128)}', space=vmem, size = 0x2000, scoped, tag = 'scratch operand']
  #allocation3 [shape = 'f32[16,128]{1,0:T(8,128)}', space=vmem, size = 0x2000, scoped, tag = 'scratch operand']
  #allocation4 [shape = 'f32[1,16,128]{2,1,0:T(8,128)}', space=vmem, size = 0x2000, scoped, tag = 'scratch operand']
  %s0 = inlined_call_operand.hbm [shape: f32[2,16,128], index: 0, kind: input, shape index: {}]
  %s1 = inlined_call_operand.hbm [shape: f32[2,16,128], index: 1, kind: input, shape index: {}]
  %s2 = inlined_call_operand.hbm [shape: f32[16,16], index: 2, kind: input, shape index: {}]
  %s3 = inlined_call_operand.vmem [shape: f32[2,1,16], index: 3, kind: input, shape index: {}]
  %s4 = inlined_call_operand.hbm [shape: f32[1,128,128], index: 4, kind: input, shape index: {}]
  %s5 = inlined_call_operand.vmem [shape: f32[1,1,128], index: 5, kind: input, shape index: {}]
  %s6 = inlined_call_operand.hbm [shape: f32[1,128,256], index: 6, kind: input, shape index: {}]
  %s7 = inlined_call_operand.vmem [shape: f32[1,1,256], index: 7, kind: input, shape index: {}]
  %s8 = inlined_call_operand.hbm [shape: f32[1,128,128], index: 8, kind: input, shape index: {}]
  %s9 = inlined_call_operand.vmem [shape: f32[1,128], index: 9, kind: input, shape index: {}]
  %s10 = inlined_call_operand.vmem [shape: f32[1,128], index: 10, kind: input, shape index: {}]
  %s11 = inlined_call_operand.vmem [shape: f32[1,128], index: 11, kind: input, shape index: {}]
  %s12 = inlined_call_operand.hbm [shape: f32[2,16,128], index: 12, kind: output, shape index: {}]
  %s13 = sld [smem:[#allocation0]]
  $region117: #{tpu_custom_call.1} parent=0
    _
  %s15 = ssub.s32 1, %s13
  %s16 = scalar_select 0, %s15, %s13
  $region1: #{tpu_custom_call.1} parent=0
    #allocation5 [shape = 'u8[16384]{0}', space=vmem, size = 0x4000, scoped, tag = 'input window, operand 0']
    #allocation6 [shape = 's32[2]{0}', space=sflag, size = 0x8, scoped, tag = 'scoped memory for tpu_custom_call.1']
    #allocation7 [shape = 's32[2]{0}', space=sflag, size = 0x8, scoped, tag = 'scoped memory for tpu_custom_call.1']
    #allocation8 [shape = 'u8[16384]{0}', space=vmem, size = 0x4000, scoped, tag = 'input window, operand 1']
    #allocation9 [shape = 's32[2]{0}', space=sflag, size = 0x8, scoped, tag = 'scoped memory for tpu_custom_call.1']
    #allocation10 [shape = 'u8[8192]{0}', space=vmem, size = 0x2000, scoped, tag = 'input window, operand 2, single buffered']
    #allocation11 [shape = 'u8[65536]{0}', space=vmem, size = 0x10000, scoped, tag = 'input window, operand 4, single buffered']
    #allocation12 [shape = 's32[1]{0}', space=sflag, size = 0x4, scoped, tag = 'scoped memory for tpu_custom_call.1']
    #allocation13 [shape = 'u8[131072]{0}', space=vmem, size = 0x20000, scoped, tag = 'input window, operand 6, single buffered']
    #allocation14 [shape = 'u8[65536]{0}', space=vmem, size = 0x10000, scoped, tag = 'input window, operand 8, single buffered']
    #allocation15 [shape = 's32[1]{0}', space=sflag, size = 0x4, scoped, tag = 'scoped memory for tpu_custom_call.1']
    #allocation16 [shape = 'u8[16384]{0}', space=vmem, size = 0x4000, scoped, tag = 'output window, operand 0']
    %17 = vsyncpa [#allocation6], 0
    %s18 = scalar_lea.sflag [#allocation6], 1
    %19 = vsyncpa %s18, 0
    %20 = vsyncpa [#allocation9], 0
    %s21 = scalar_lea.sflag [#allocation9], 1
    %22 = vsyncpa %s21, 0
    %23 = vsyncpa [#allocation12], 0
    %24 = vsyncpa [#allocation15], 0
    %25 = vsyncpa [#allocation7], 0
    %s26 = scalar_lea.sflag [#allocation7], 1
    %27 = vsyncpa %s26, 0
    loop: start=0, step=1, limit=4
    $region2: #{tpu_custom_call.1} parent=1 // loop_pre_header
      _
    $region3: #{tpu_custom_call.1} parent=1 // loop_header
      %s29 = sphi 0, %s33
      %p30 = scmp.ge.s32.totalorder %s29, 4
      %s36 = sphi 0, %s55
      %s37 = sphi 0, %s51
      %s38 = sphi 0, %s47
      %s39 = sphi 0, %s36
      %s40 = sphi 0, %s37
      %s41 = sphi 0, %s38
      %s42 = sphi 0, %s39
      %s43 = sphi 0, %s40
      %s44 = sphi 0, %s41
      %s60 = sphi 0, %s62
      %s63 = sphi 0, %s60
      %s64 = sphi 0, %s63
      %s80 = sphi 0, %s64
      %s86 = sphi 0, %s88
      %s89 = sphi 0, %s86
      %s90 = sphi 0, %s89
      %s106 = sphi 0, %s90
      %s112 = sphi 0, %s114
      %s115 = sphi 0, %s112
      %s116 = sphi 0, %s115
      %s132 = sphi 0, %s116
      %s138 = sphi 0, %s140
      %s141 = sphi 0, %s138
      %s142 = sphi 0, %s141
      %s158 = sphi 0, %s142
      %s164 = sphi 0, %s166
      %s167 = sphi 0, %s164
      %s168 = sphi 0, %s167
      %s184 = sphi 0, %s168
      %s190 = sphi 0, %s192
      %s193 = sphi 0, %s190
      %s194 = sphi 0, %s193
      %s210 = sphi 0, %s194
      %s216 = sphi 0, %s218
      %s219 = sphi 0, %s216
      %s220 = sphi 0, %s219
      %s236 = sphi 0, %s220
      %s242 = sphi 0, %s244
      %s245 = sphi 0, %s242
      %s246 = sphi 0, %s245
      %s262 = sphi 0, %s246
      %s266 = sphi 0, %s266
      %s268 = sphi 0, %s266
      %s269 = sphi 0, %s268
      %s283 = sphi 0, %s269
      %s287 = sphi 0, %s287
      %s289 = sphi 0, %s287
      %s290 = sphi 0, %s289
      %s304 = sphi 0, %s290
      %s308 = sphi 0, %s308
      %s310 = sphi 0, %s308
      %s311 = sphi 0, %s310
      %s325 = sphi 0, %s311
      %s329 = sphi 0, %s329
      %s331 = sphi 0, %s329
      %s332 = sphi 0, %s331
      %s346 = sphi 0, %s332
      %s354 = sphi 0, %s356
      %s357 = sphi 0, %s354
      %s358 = sphi 0, %s357
      %s374 = sphi 0, %s358
    $region4: #{tpu_custom_call.1} parent=1 // loop_header_branch
      %32 = sbr.rel (%p30) target = $region8
    $region5: #{tpu_custom_call.1} parent=1 // loop_body
      %s34 = ssub.s32 %s29, 1
      %s35 = ssub.s32 %s29, 2
      %s45 = sadd.s32 1, %s38
      %p46 = scmp.ge.s32.totalorder %s45, 1
      %s47 = scalar_select %p46, 0, %s45
      %s48 = sadd.s32 1, %s37
      %s49 = scalar_select %p46, %s48, %s37
      %p50 = scmp.ge.s32.totalorder %s49, 1
      %s51 = scalar_select %p50, 0, %s49
      %s52 = sadd.s32 1, %s36
      %s53 = scalar_select %p50, %s52, %s36
      %p54 = scmp.ge.s32.totalorder %s53, 2
      %s55 = scalar_select %p54, 0, %s53
      %s56 = ssub.s32 %s36, %s55
      %s57 = ssub.s32 %s38, %s47
      %s58 = sor.u32 %s56, %s57
      %p59 = scmp.eq.s32.totalorder %s58, 0
      %s61 = sadd.s32 %s60, 1
      %s62 = scalar_select %p59, %s60, %s61
      %p65 = pneg %p59
      %p66 = scmp.eq.s32.totalorder %s29, 1
      %p67 = por %p65, %p66
      %p68 = scmp.ne.s32.totalorder %s60, %s63
      %p69 = scmp.eq.s32.totalorder %s29, 0
      %p70 = por %p68, %p69
      %p71 = scmp.ne.s32.totalorder %s60, %s63
      %p72 = scmp.eq.s32.totalorder %s34, 1
      %p73 = por %p71, %p72
      %p74 = scmp.ne.s32.totalorder %s63, %s64
      %p75 = scmp.eq.s32.totalorder %s34, 0
      %p76 = por %p74, %p75
      %p77 = scmp.ne.s32.totalorder %s63, %s64
      %p78 = scmp.eq.s32.totalorder %s35, 1
      %p79 = por %p77, %p78
      %p81 = scmp.ne.s32.totalorder %s64, %s80
      %p82 = scmp.eq.s32.totalorder %s35, 0
      %p83 = por %p81, %p82
      %s84 = ssub.s32 %s36, %s55
      %p85 = scmp.eq.s32.totalorder %s84, 0
      %s87 = sadd.s32 %s86, 1
      %s88 = scalar_select %p85, %s86, %s87
      %p91 = pneg %p85
      %p92 = scmp.eq.s32.totalorder %s29, 1
      %p93 = por %p91, %p92
      %p94 = scmp.ne.s32.totalorder %s86, %s89
      %p95 = scmp.eq.s32.totalorder %s29, 0
      %p96 = por %p94, %p95
      %p97 = scmp.ne.s32.totalorder %s86, %s89
      %p98 = scmp.eq.s32.totalorder %s34, 1
      %p99 = por %p97, %p98
      %p100 = scmp.ne.s32.totalorder %s89, %s90
      %p101 = scmp.eq.s32.totalorder %s34, 0
      %p102 = por %p100, %p101
      %p103 = scmp.ne.s32.totalorder %s89, %s90
      %p104 = scmp.eq.s32.totalorder %s35, 1
      %p105 = por %p103, %p104
      %p107 = scmp.ne.s32.totalorder %s90, %s106
      %p108 = scmp.eq.s32.totalorder %s35, 0
      %p109 = por %p107, %p108
      %s110 = ssub.s32 %s38, %s47
      %p111 = scmp.eq.s32.totalorder %s110, 0
      %s113 = sadd.s32 %s112, 1
      %s114 = scalar_select %p111, %s112, %s113
      %p117 = pneg %p111
      %p118 = scmp.eq.s32.totalorder %s29, 1
      %p119 = por %p117, %p118
      %p120 = scmp.ne.s32.totalorder %s112, %s115
      %p121 = scmp.eq.s32.totalorder %s29, 0
      %p122 = por %p120, %p121
      %p123 = scmp.ne.s32.totalorder %s112, %s115
      %p124 = scmp.eq.s32.totalorder %s34, 1
      %p125 = por %p123, %p124
      %p126 = scmp.ne.s32.totalorder %s115, %s116
      %p127 = scmp.eq.s32.totalorder %s34, 0
      %p128 = por %p126, %p127
      %p129 = scmp.ne.s32.totalorder %s115, %s116
      %p130 = scmp.eq.s32.totalorder %s35, 1
      %p131 = por %p129, %p130
      %p133 = scmp.ne.s32.totalorder %s116, %s132
      %p134 = scmp.eq.s32.totalorder %s35, 0
      %p135 = por %p133, %p134
      %s136 = ssub.s32 %s36, %s55
      %p137 = scmp.eq.s32.totalorder %s136, 0
      %s139 = sadd.s32 %s138, 1
      %s140 = scalar_select %p137, %s138, %s139
      %p143 = pneg %p137
      %p144 = scmp.eq.s32.totalorder %s29, 1
      %p145 = por %p143, %p144
      %p146 = scmp.ne.s32.totalorder %s138, %s141
      %p147 = scmp.eq.s32.totalorder %s29, 0
      %p148 = por %p146, %p147
      %p149 = scmp.ne.s32.totalorder %s138, %s141
      %p150 = scmp.eq.s32.totalorder %s34, 1
      %p151 = por %p149, %p150
      %p152 = scmp.ne.s32.totalorder %s141, %s142
      %p153 = scmp.eq.s32.totalorder %s34, 0
      %p154 = por %p152, %p153
      %p155 = scmp.ne.s32.totalorder %s141, %s142
      %p156 = scmp.eq.s32.totalorder %s35, 1
      %p157 = por %p155, %p156
      %p159 = scmp.ne.s32.totalorder %s142, %s158
      %p160 = scmp.eq.s32.totalorder %s35, 0
      %p161 = por %p159, %p160
      %s162 = ssub.s32 %s37, %s51
      %p163 = scmp.eq.s32.totalorder %s162, 0
      %s165 = sadd.s32 %s164, 1
      %s166 = scalar_select %p163, %s164, %s165
      %p169 = pneg %p163
      %p170 = scmp.eq.s32.totalorder %s29, 1
      %p171 = por %p169, %p170
      %p172 = scmp.ne.s32.totalorder %s164, %s167
      %p173 = scmp.eq.s32.totalorder %s29, 0
      %p174 = por %p172, %p173
      %p175 = scmp.ne.s32.totalorder %s164, %s167
      %p176 = scmp.eq.s32.totalorder %s34, 1
      %p177 = por %p175, %p176
      %p178 = scmp.ne.s32.totalorder %s167, %s168
      %p179 = scmp.eq.s32.totalorder %s34, 0
      %p180 = por %p178, %p179
      %p181 = scmp.ne.s32.totalorder %s167, %s168
      %p182 = scmp.eq.s32.totalorder %s35, 1
      %p183 = por %p181, %p182
      %p185 = scmp.ne.s32.totalorder %s168, %s184
      %p186 = scmp.eq.s32.totalorder %s35, 0
      %p187 = por %p185, %p186
      %s188 = ssub.s32 %s37, %s51
      %p189 = scmp.eq.s32.totalorder %s188, 0
      %s191 = sadd.s32 %s190, 1
      %s192 = scalar_select %p189, %s190, %s191
      %p195 = pneg %p189
      %p196 = scmp.eq.s32.totalorder %s29, 1
      %p197 = por %p195, %p196
      %p198 = scmp.ne.s32.totalorder %s190, %s193
      %p199 = scmp.eq.s32.totalorder %s29, 0
      %p200 = por %p198, %p199
      %p201 = scmp.ne.s32.totalorder %s190, %s193
      %p202 = scmp.eq.s32.totalorder %s34, 1
      %p203 = por %p201, %p202
      %p204 = scmp.ne.s32.totalorder %s193, %s194
      %p205 = scmp.eq.s32.totalorder %s34, 0
      %p206 = por %p204, %p205
      %p207 = scmp.ne.s32.totalorder %s193, %s194
      %p208 = scmp.eq.s32.totalorder %s35, 1
      %p209 = por %p207, %p208
      %p211 = scmp.ne.s32.totalorder %s194, %s210
      %p212 = scmp.eq.s32.totalorder %s35, 0
      %p213 = por %p211, %p212
      %s214 = ssub.s32 %s37, %s51
      %p215 = scmp.eq.s32.totalorder %s214, 0
      %s217 = sadd.s32 %s216, 1
      %s218 = scalar_select %p215, %s216, %s217
      %p221 = pneg %p215
      %p222 = scmp.eq.s32.totalorder %s29, 1
      %p223 = por %p221, %p222
      %p224 = scmp.ne.s32.totalorder %s216, %s219
      %p225 = scmp.eq.s32.totalorder %s29, 0
      %p226 = por %p224, %p225
      %p227 = scmp.ne.s32.totalorder %s216, %s219
      %p228 = scmp.eq.s32.totalorder %s34, 1
      %p229 = por %p227, %p228
      %p230 = scmp.ne.s32.totalorder %s219, %s220
      %p231 = scmp.eq.s32.totalorder %s34, 0
      %p232 = por %p230, %p231
      %p233 = scmp.ne.s32.totalorder %s219, %s220
      %p234 = scmp.eq.s32.totalorder %s35, 1
      %p235 = por %p233, %p234
      %p237 = scmp.ne.s32.totalorder %s220, %s236
      %p238 = scmp.eq.s32.totalorder %s35, 0
      %p239 = por %p237, %p238
      %s240 = ssub.s32 %s37, %s51
      %p241 = scmp.eq.s32.totalorder %s240, 0
      %s243 = sadd.s32 %s242, 1
      %s244 = scalar_select %p241, %s242, %s243
      %p247 = pneg %p241
      %p248 = scmp.eq.s32.totalorder %s29, 1
      %p249 = por %p247, %p248
      %p250 = scmp.ne.s32.totalorder %s242, %s245
      %p251 = scmp.eq.s32.totalorder %s29, 0
      %p252 = por %p250, %p251
      %p253 = scmp.ne.s32.totalorder %s242, %s245
      %p254 = scmp.eq.s32.totalorder %s34, 1
      %p255 = por %p253, %p254
      %p256 = scmp.ne.s32.totalorder %s245, %s246
      %p257 = scmp.eq.s32.totalorder %s34, 0
      %p258 = por %p256, %p257
      %p259 = scmp.ne.s32.totalorder %s245, %s246
      %p260 = scmp.eq.s32.totalorder %s35, 1
      %p261 = por %p259, %p260
      %p263 = scmp.ne.s32.totalorder %s246, %s262
      %p264 = scmp.eq.s32.totalorder %s35, 0
      %p265 = por %p263, %p264
      %s267 = sadd.s32 %s266, 1
      %p270 = scmp.eq.s32.totalorder %s29, 1
      %p271 = scmp.ne.s32.totalorder %s266, %s268
      %p272 = scmp.eq.s32.totalorder %s29, 0
      %p273 = por %p271, %p272
      %p274 = scmp.ne.s32.totalorder %s266, %s268
      %p275 = scmp.eq.s32.totalorder %s34, 1
      %p276 = por %p274, %p275
      %p277 = scmp.ne.s32.totalorder %s268, %s269
      %p278 = scmp.eq.s32.totalorder %s34, 0
      %p279 = por %p277, %p278
      %p280 = scmp.ne.s32.totalorder %s268, %s269
      %p281 = scmp.eq.s32.totalorder %s35, 1
      %p282 = por %p280, %p281
      %p284 = scmp.ne.s32.totalorder %s269, %s283
      %p285 = scmp.eq.s32.totalorder %s35, 0
      %p286 = por %p284, %p285
      %s288 = sadd.s32 %s287, 1
      %p291 = scmp.eq.s32.totalorder %s29, 1
      %p292 = scmp.ne.s32.totalorder %s287, %s289
      %p293 = scmp.eq.s32.totalorder %s29, 0
      %p294 = por %p292, %p293
      %p295 = scmp.ne.s32.totalorder %s287, %s289
      %p296 = scmp.eq.s32.totalorder %s34, 1
      %p297 = por %p295, %p296
      %p298 = scmp.ne.s32.totalorder %s289, %s290
      %p299 = scmp.eq.s32.totalorder %s34, 0
      %p300 = por %p298, %p299
      %p301 = scmp.ne.s32.totalorder %s289, %s290
      %p302 = scmp.eq.s32.totalorder %s35, 1
      %p303 = por %p301, %p302
      %p305 = scmp.ne.s32.totalorder %s290, %s304
      %p306 = scmp.eq.s32.totalorder %s35, 0
      %p307 = por %p305, %p306
      %s309 = sadd.s32 %s308, 1
      %p312 = scmp.eq.s32.totalorder %s29, 1
      %p313 = scmp.ne.s32.totalorder %s308, %s310
      %p314 = scmp.eq.s32.totalorder %s29, 0
      %p315 = por %p313, %p314
      %p316 = scmp.ne.s32.totalorder %s308, %s310
      %p317 = scmp.eq.s32.totalorder %s34, 1
      %p318 = por %p316, %p317
      %p319 = scmp.ne.s32.totalorder %s310, %s311
      %p320 = scmp.eq.s32.totalorder %s34, 0
      %p321 = por %p319, %p320
      %p322 = scmp.ne.s32.totalorder %s310, %s311
      %p323 = scmp.eq.s32.totalorder %s35, 1
      %p324 = por %p322, %p323
      %p326 = scmp.ne.s32.totalorder %s311, %s325
      %p327 = scmp.eq.s32.totalorder %s35, 0
      %p328 = por %p326, %p327
      %s330 = sadd.s32 %s329, 1
      %p333 = scmp.eq.s32.totalorder %s29, 1
      %p334 = scmp.ne.s32.totalorder %s329, %s331
      %p335 = scmp.eq.s32.totalorder %s29, 0
      %p336 = por %p334, %p335
      %p337 = scmp.ne.s32.totalorder %s329, %s331
      %p338 = scmp.eq.s32.totalorder %s34, 1
      %p339 = por %p337, %p338
      %p340 = scmp.ne.s32.totalorder %s331, %s332
      %p341 = scmp.eq.s32.totalorder %s34, 0
      %p342 = por %p340, %p341
      %p343 = scmp.ne.s32.totalorder %s331, %s332
      %p344 = scmp.eq.s32.totalorder %s35, 1
      %p345 = por %p343, %p344
      %p347 = scmp.ne.s32.totalorder %s332, %s346
      %p348 = scmp.eq.s32.totalorder %s35, 0
      %p349 = por %p347, %p348
      %s350 = ssub.s32 %s36, %s55
      %s351 = ssub.s32 %s38, %s47
      %s352 = sor.u32 %s350, %s351
      %p353 = scmp.eq.s32.totalorder %s352, 0
      %s355 = sadd.s32 %s354, 1
      %s356 = scalar_select %p353, %s354, %s355
      %p359 = pneg %p353
      %p360 = scmp.eq.s32.totalorder %s29, 1
      %p361 = por %p359, %p360
      %p362 = scmp.ne.s32.totalorder %s354, %s357
      %p363 = scmp.eq.s32.totalorder %s29, 0
      %p364 = por %p362, %p363
      %p365 = scmp.ne.s32.totalorder %s354, %s357
      %p366 = scmp.eq.s32.totalorder %s34, 1
      %p367 = por %p365, %p366
      %p368 = scmp.ne.s32.totalorder %s357, %s358
      %p369 = scmp.eq.s32.totalorder %s34, 0
      %p370 = por %p368, %p369
      %p371 = scmp.ne.s32.totalorder %s357, %s358
      %p372 = scmp.eq.s32.totalorder %s35, 1
      %p373 = por %p371, %p372
      %p375 = scmp.ne.s32.totalorder %s358, %s374
      %p376 = scmp.eq.s32.totalorder %s35, 0
      %p377 = por %p375, %p376
      %p378 = scmp.le.s32.totalorder 1, %s29
      %p379 = scmp.lt.s32.totalorder %s29, 3
      %p380 = pnand %p378, %p379
      %p381 = pneg %p380
      // Predicated region
      $region9: #{tpu_custom_call.1} parent=5 // pred_check
        _
      $region10: #{tpu_custom_call.1} parent=5 // pred_check_branch
        %383 = sbr.rel (%p380) target = $region12
      $region11: #{tpu_custom_call.1} parent=5 // pred_region
        %s384 = ssub.s32 %s29, 1
        // Predicated region
        $region13: #{tpu_custom_call.1} parent=11 // pred_check
          %p385 = pneg %p128
        $region14: #{tpu_custom_call.1} parent=11 // pred_check_branch
          %387 = sbr.rel (%p385) target = $region16
        $region15: #{tpu_custom_call.1} parent=11 // pred_region
          %s388 = smul.u32 2, %s41
          %s390 = ssub.s32 256, 256
          %391 = vsyncadd [#allocation9], %s390
          %s392 = smul.addr %s388, 128
          %s393 = scalar_lea.hbm %s2, %s392
          %s394 = sshll.u32 [#allocation10], 4
          %s395 = int_to_ptr.vmem [resolvable:$true] %s394
          %400 = dma.hbm_to_vmem [thread:$0]  %s393, 256, %s395, [#allocation9], 128, 128, 8
        $region16: #{tpu_custom_call.1} parent=11 // pred_fallthru
          _
        // Predicated region
        $region17: #{tpu_custom_call.1} parent=11 // pred_check
          %p401 = pneg %p180
        $region18: #{tpu_custom_call.1} parent=11 // pred_check_branch
          %403 = sbr.rel (%p401) target = $region20
        $region19: #{tpu_custom_call.1} parent=11 // pred_region
          %s405 = ssub.s32 2048, 2048
          %406 = vsyncadd [#allocation12], %s405
          %s407 = smul.addr %s40, 16
          %s408 = smul.addr %s407, 128
          %s409 = scalar_lea.hbm %s4, %s408
          %s410 = sshll.u32 [#allocation11], 4
          %s411 = int_to_ptr.vmem [resolvable:$true] %s410
          %416 = dma.hbm_to_vmem [thread:$0]  %s409, 2048, %s411, [#allocation12], 128, 128, 8
        $region20: #{tpu_custom_call.1} parent=11 // pred_fallthru
          _
        // Predicated region
        $region21: #{tpu_custom_call.1} parent=11 // pred_check
          %p417 = pneg %p206
        $region22: #{tpu_custom_call.1} parent=11 // pred_check_branch
          %419 = sbr.rel (%p417) target = $region24
        $region23: #{tpu_custom_call.1} parent=11 // pred_region
          %p420 = scmp.lt.s32.totalorder %s40, 0
          %s421 = scalar_select %p420, %s40, 0
          %s422 = scalar_lea.vmem %s5, %s421
        $region24: #{tpu_custom_call.1} parent=11 // pred_fallthru
          _
        // Predicated region
        $region25: #{tpu_custom_call.1} parent=11 // pred_check
          %p423 = pneg %p232
        $region26: #{tpu_custom_call.1} parent=11 // pred_check_branch
          %425 = sbr.rel (%p423) target = $region28
        $region27: #{tpu_custom_call.1} parent=11 // pred_region
          %s427 = ssub.s32 4096, 4096
          %428 = vsyncadd [#allocation12], %s427
          %s429 = smul.addr %s40, 32
          %s430 = smul.addr %s429, 128
          %s431 = scalar_lea.hbm %s6, %s430
          %s432 = sshll.u32 [#allocation13], 4
          %s433 = int_to_ptr.vmem [resolvable:$true] %s432
          %438 = dma.hbm_to_vmem [thread:$0]  %s431, 4096, %s433, [#allocation12], 256, 256, 16
        $region28: #{tpu_custom_call.1} parent=11 // pred_fallthru
          _
        // Predicated region
        $region29: #{tpu_custom_call.1} parent=11 // pred_check
          %p439 = pneg %p258
        $region30: #{tpu_custom_call.1} parent=11 // pred_check_branch
          %441 = sbr.rel (%p439) target = $region32
        $region31: #{tpu_custom_call.1} parent=11 // pred_region
          %p442 = scmp.lt.s32.totalorder %s40, 0
          %s443 = scalar_select %p442, %s40, 0
          %s444 = smul.addr %s443, 2
          %s445 = scalar_lea.vmem %s7, %s444
        $region32: #{tpu_custom_call.1} parent=11 // pred_fallthru
          _
        // Predicated region
        $region33: #{tpu_custom_call.1} parent=11 // pred_check
          %p446 = pneg %p279
        $region34: #{tpu_custom_call.1} parent=11 // pred_check_branch
          %448 = sbr.rel (%p446) target = $region36
        $region35: #{tpu_custom_call.1} parent=11 // pred_region
          %s450 = ssub.s32 2048, 2048
          %451 = vsyncadd [#allocation15], %s450
          %s452 = sshll.u32 [#allocation14], 4
          %s453 = int_to_ptr.vmem [resolvable:$true] %s452
          %458 = dma.hbm_to_vmem [thread:$0]  %s8, 2048, %s453, [#allocation15], 128, 128, 8
        $region36: #{tpu_custom_call.1} parent=11 // pred_fallthru
          _
        // Predicated region
        $region37: #{tpu_custom_call.1} parent=11 // pred_check
          %p459 = pneg %p300
        $region38: #{tpu_custom_call.1} parent=11 // pred_check_branch
          %461 = sbr.rel (%p459) target = $region40
        $region39: #{tpu_custom_call.1} parent=11 // pred_region
          _
        $region40: #{tpu_custom_call.1} parent=11 // pred_fallthru
          _
        // Predicated region
        $region41: #{tpu_custom_call.1} parent=11 // pred_check
          %p462 = pneg %p321
        $region42: #{tpu_custom_call.1} parent=11 // pred_check_branch
          %464 = sbr.rel (%p462) target = $region44
        $region43: #{tpu_custom_call.1} parent=11 // pred_region
          _
        $region44: #{tpu_custom_call.1} parent=11 // pred_fallthru
          _
        // Predicated region
        $region45: #{tpu_custom_call.1} parent=11 // pred_check
          %p465 = pneg %p342
        $region46: #{tpu_custom_call.1} parent=11 // pred_check_branch
          %467 = sbr.rel (%p465) target = $region48
        $region47: #{tpu_custom_call.1} parent=11 // pred_region
          _
        $region48: #{tpu_custom_call.1} parent=11 // pred_fallthru
          _
      $region12: #{tpu_custom_call.1} parent=5 // pred_fallthru
        _
      %p468 = scmp.lt.s32.totalorder %s29, 2
      // Predicated region
      $region49: #{tpu_custom_call.1} parent=5 // pred_check
        %p469 = pneg %p468
      $region50: #{tpu_custom_call.1} parent=5 // pred_check_branch
        %471 = sbr.rel (%p469) target = $region52
      $region51: #{tpu_custom_call.1} parent=5 // pred_region
        // Predicated region
        $region53: #{tpu_custom_call.1} parent=51 // pred_check
          %p472 = pneg %p70
        $region54: #{tpu_custom_call.1} parent=51 // pred_check_branch
          %474 = sbr.rel (%p472) target = $region56
        $region55: #{tpu_custom_call.1} parent=51 // pred_region
          %s475 = sand.u32 %s60, 1
          %s476 = scalar_lea.sflag [#allocation6], %s475
          %s477 = sand.u32 %s60, 1
          %s478 = smul.addr %s477, 16
          %s479 = scalar_lea.vmem [#allocation5], %s478
          %s480 = smul.u32 2, %s38
          %s482 = ssub.s32 256, 256
          %483 = vsyncadd %s476, %s482
          %s484 = smul.addr %s36, 2
          %s485 = sadd.s32 %s480, %s484
          %s486 = smul.addr %s485, 128
          %s487 = scalar_lea.hbm %s0, %s486
          %s488 = sshll.u32 %s479, 4
          %s489 = int_to_ptr.vmem [resolvable:$true] %s488
          %494 = dma.hbm_to_vmem [thread:$0]  %s487, 256, %s489, %s476, 128, 128, 8
        $region56: #{tpu_custom_call.1} parent=51 // pred_fallthru
          _
        // Predicated region
        $region57: #{tpu_custom_call.1} parent=51 // pred_check
          %p495 = pneg %p96
        $region58: #{tpu_custom_call.1} parent=51 // pred_check_branch
          %497 = sbr.rel (%p495) target = $region60
        $region59: #{tpu_custom_call.1} parent=51 // pred_region
          %s498 = sand.u32 %s29, 1
          %s499 = scalar_lea.sflag [#allocation9], %s498
          %s500 = sand.u32 %s86, 1
          %s501 = smul.addr %s500, 16
          %s502 = scalar_lea.vmem [#allocation8], %s501
          %s504 = ssub.s32 256, 256
          %505 = vsyncadd %s499, %s504
          %s506 = smul.addr %s36, 2
          %s507 = smul.addr %s506, 128
          %s508 = scalar_lea.hbm %s1, %s507
          %s509 = sshll.u32 %s502, 4
          %s510 = int_to_ptr.vmem [resolvable:$true] %s509
          %515 = dma.hbm_to_vmem [thread:$0]  %s508, 256, %s510, %s499, 128, 128, 8
        $region60: #{tpu_custom_call.1} parent=51 // pred_fallthru
          _
        // Predicated region
        $region61: #{tpu_custom_call.1} parent=51 // pred_check
          %p516 = pneg %p148
        $region62: #{tpu_custom_call.1} parent=51 // pred_check_branch
          %518 = sbr.rel (%p516) target = $region64
        $region63: #{tpu_custom_call.1} parent=51 // pred_region
          %p519 = scmp.lt.s32.totalorder %s36, 1
          %s520 = scalar_select %p519, %s36, 1
          %s521 = scalar_lea.vmem %s3, %s520
        $region64: #{tpu_custom_call.1} parent=51 // pred_fallthru
          _
      $region52: #{tpu_custom_call.1} parent=5 // pred_fallthru
        _
      %p522 = scmp.le.s32.totalorder 1, %s29
      %p523 = scmp.lt.s32.totalorder %s29, 3
      %p524 = pnand %p522, %p523
      %p525 = pneg %p524
      // Predicated region
      $region65: #{tpu_custom_call.1} parent=5 // pred_check
        _
      $region66: #{tpu_custom_call.1} parent=5 // pred_check_branch
        %527 = sbr.rel (%p524) target = $region68
      $region67: #{tpu_custom_call.1} parent=5 // pred_region
        %s528 = ssub.s32 %s29, 1
        %s529 = sand.u32 %s63, 1
        %s530 = scalar_lea.sflag [#allocation6], %s529
        %s531 = sand.u32 %s63, 1
        %s532 = smul.addr %s531, 16
        %s533 = scalar_lea.vmem [#allocation5], %s532
        // Predicated region
        $region69: #{tpu_custom_call.1} parent=67 // pred_check
          %p534 = pneg %p76
        $region70: #{tpu_custom_call.1} parent=67 // pred_check_branch
          %536 = sbr.rel (%p534) target = $region72
        $region71: #{tpu_custom_call.1} parent=67 // pred_region
          %537 = dma.done %s530, 256
        $region72: #{tpu_custom_call.1} parent=67 // pred_fallthru
          _
        %s538 = sand.u32 %s34, 1
        %s539 = scalar_lea.sflag [#allocation9], %s538
        %s540 = sand.u32 %s89, 1
        %s541 = smul.addr %s540, 16
        %s542 = scalar_lea.vmem [#allocation8], %s541
        // Predicated region
        $region73: #{tpu_custom_call.1} parent=67 // pred_check
          %p543 = pneg %p102
        $region74: #{tpu_custom_call.1} parent=67 // pred_check_branch
          %545 = sbr.rel (%p543) target = $region76
        $region75: #{tpu_custom_call.1} parent=67 // pred_region
          %546 = dma.done %s539, 256
        $region76: #{tpu_custom_call.1} parent=67 // pred_fallthru
          _
        // Predicated region
        $region77: #{tpu_custom_call.1} parent=67 // pred_check
          %p547 = pneg %p128
        $region78: #{tpu_custom_call.1} parent=67 // pred_check_branch
          %549 = sbr.rel (%p547) target = $region80
        $region79: #{tpu_custom_call.1} parent=67 // pred_region
          %550 = dma.done [#allocation9], 256
        $region80: #{tpu_custom_call.1} parent=67 // pred_fallthru
          _
        // Predicated region
        $region81: #{tpu_custom_call.1} parent=67 // pred_check
          %p551 = pneg %p180
        $region82: #{tpu_custom_call.1} parent=67 // pred_check_branch
          %553 = sbr.rel (%p551) target = $region84
        $region83: #{tpu_custom_call.1} parent=67 // pred_region
          %554 = dma.done [#allocation12], 2048
        $region84: #{tpu_custom_call.1} parent=67 // pred_fallthru
          _
        // Predicated region
        $region85: #{tpu_custom_call.1} parent=67 // pred_check
          %p555 = pneg %p232
        $region86: #{tpu_custom_call.1} parent=67 // pred_check_branch
          %557 = sbr.rel (%p555) target = $region88
        $region87: #{tpu_custom_call.1} parent=67 // pred_region
          %558 = dma.done [#allocation12], 4096
        $region88: #{tpu_custom_call.1} parent=67 // pred_fallthru
          _
        // Predicated region
        $region89: #{tpu_custom_call.1} parent=67 // pred_check
          %p559 = pneg %p279
        $region90: #{tpu_custom_call.1} parent=67 // pred_check_branch
          %561 = sbr.rel (%p559) target = $region92
        $region91: #{tpu_custom_call.1} parent=67 // pred_region
          %562 = dma.done [#allocation15], 2048
        $region92: #{tpu_custom_call.1} parent=67 // pred_fallthru
          _
        %s563 = sand.u32 %s63, 1
        %s564 = scalar_lea.sflag [#allocation6], %s563
        %s565 = sand.u32 %s63, 1
        %s566 = smul.addr %s565, 16
        %s567 = scalar_lea.vmem [#allocation5], %s566
        %p568 = pneg %p76
        %p569 = pneg %p73
        %s570 = sand.u32 %s34, 1
        %s571 = scalar_lea.sflag [#allocation9], %s570
        %s572 = sand.u32 %s89, 1
        %s573 = smul.addr %s572, 16
        %s574 = scalar_lea.vmem [#allocation8], %s573
        %p575 = pneg %p102
        %p576 = pneg %p99
        %p577 = pneg %p128
        %p578 = pneg %p125
        %p579 = scmp.lt.s32.totalorder %s39, 1
        %s580 = scalar_select %p579, %s39, 1
        %s581 = scalar_lea.vmem %s3, %s580
        %p582 = pneg %p154
        %p583 = pneg %p151
        %p584 = pneg %p180
        %p585 = pneg %p177
        %p586 = scmp.lt.s32.totalorder %s40, 0
        %s587 = scalar_select %p586, %s40, 0
        %s588 = scalar_lea.vmem %s5, %s587
        %p589 = pneg %p206
        %p590 = pneg %p203
        %p591 = pneg %p232
        %p592 = pneg %p229
        %p593 = scmp.lt.s32.totalorder %s40, 0
        %s594 = scalar_select %p593, %s40, 0
        %s595 = smul.addr %s594, 2
        %s596 = scalar_lea.vmem %s7, %s595
        %p597 = pneg %p258
        %p598 = pneg %p255
        %p599 = pneg %p279
        %p600 = pneg %p276
        %p601 = pneg %p300
        %p602 = pneg %p297
        %p603 = pneg %p321
        %p604 = pneg %p318
        %p605 = pneg %p342
        %p606 = pneg %p339
        %p607 = pneg %p370
        %p608 = pneg %p367
        %s609 = sand.u32 %s357, 1
        %s610 = scalar_lea.sflag [#allocation7], %s609
        %s611 = sand.u32 %s357, 1
        %s612 = smul.addr %s611, 16
        %s613 = scalar_lea.vmem [#allocation16], %s612
        %s614 = smul.u32 2, %s41
        %s615 = smul.u32 2, %s41
        %p616 = scmp.lt.s32.totalorder %s39, 1
        %s617 = scalar_select %p616, %s39, 1
        %s618 = scalar_lea.vmem %s3, %s617
        %p619 = scmp.lt.s32.totalorder %s40, 0
        %s620 = scalar_select %p619, %s40, 0
        %s621 = scalar_lea.vmem %s5, %s620
        %p622 = scmp.lt.s32.totalorder %s40, 0
        %s623 = scalar_select %p622, %s40, 0
        %s624 = smul.addr %s623, 2
        %s625 = scalar_lea.vmem %s7, %s624
        %s626 = smul.u32 2, %s41
        %p627 = scmp.eq.s32.totalorder %s41, 0
        // Predicated region
        $region93: #{tpu_custom_call.1} parent=67 // pred_check
          %p628 = pneg %p627
        $region94: #{tpu_custom_call.1} parent=67 // pred_check_branch
          %630 = sbr.rel (%p628) target = $region96
        $region95: #{tpu_custom_call.1} parent=67 // pred_region
          %v631 = vld [vmem:[%s542] sm:$0xff]
          %v632 = vld [vmem:[%s542 + $0x8] sm:$0xff]
          %v633 = vld [vmem:[#allocation13] sm:$0xff]
          %v634 = vld [vmem:[#allocation13 + $0x8] sm:$0xff]
          %v635 = vld [vmem:[#allocation13 + $0x10] sm:$0xff]
          %v636 = vld [vmem:[#allocation13 + $0x18] sm:$0xff]
          %v637 = vld [vmem:[#allocation13 + $0x20] sm:$0xff]
          %v638 = vld [vmem:[#allocation13 + $0x28] sm:$0xff]
          %v639 = vld [vmem:[#allocation13 + $0x30] sm:$0xff]
          %v640 = vld [vmem:[#allocation13 + $0x38] sm:$0xff]
          %v641 = vld [vmem:[#allocation13 + $0x40] sm:$0xff]
          %v642 = vld [vmem:[#allocation13 + $0x48] sm:$0xff]
          %v643 = vld [vmem:[#allocation13 + $0x50] sm:$0xff]
          %v644 = vld [vmem:[#allocation13 + $0x58] sm:$0xff]
          %v645 = vld [vmem:[#allocation13 + $0x60] sm:$0xff]
          %v646 = vld [vmem:[#allocation13 + $0x68] sm:$0xff]
          %v647 = vld [vmem:[#allocation13 + $0x70] sm:$0xff]
          %v648 = vld [vmem:[#allocation13 + $0x78] sm:$0xff]
          %v649 = vld [vmem:[#allocation13 + $0x80] sm:$0xff]
          %v650 = vld [vmem:[#allocation13 + $0x88] sm:$0xff]
          %v651 = vld [vmem:[#allocation13 + $0x90] sm:$0xff]
          %v652 = vld [vmem:[#allocation13 + $0x98] sm:$0xff]
          %v653 = vld [vmem:[#allocation13 + $0xa0] sm:$0xff]
          %v654 = vld [vmem:[#allocation13 + $0xa8] sm:$0xff]
          %v655 = vld [vmem:[#allocation13 + $0xb0] sm:$0xff]
          %v656 = vld [vmem:[#allocation13 + $0xb8] sm:$0xff]
          %v657 = vld [vmem:[#allocation13 + $0xc0] sm:$0xff]
          %v658 = vld [vmem:[#allocation13 + $0xc8] sm:$0xff]
          %v659 = vld [vmem:[#allocation13 + $0xd0] sm:$0xff]
          %v660 = vld [vmem:[#allocation13 + $0xd8] sm:$0xff]
          %v661 = vld [vmem:[#allocation13 + $0xe0] sm:$0xff]
          %v662 = vld [vmem:[#allocation13 + $0xe8] sm:$0xff]
          %v663 = vld [vmem:[#allocation13 + $0xf0] sm:$0xff]
          %v664 = vld [vmem:[#allocation13 + $0xf8] sm:$0xff]
          %v665 = vld [vmem:[%s625] sm:$0x3]
          %v667 = vlaneseq
          %v668 = vshrl.u32 %v667, 7
          %v669 = vsub.s32 0, %v668
          %v670 = vrot.slane %v665, %v669
          %v671 = vlaneseq
          %v672 = vshrl.u32 %v671, 7
          %v673 = vsub.s32 1, %v672
          %v674 = vrot.slane %v665, %v673
          %677 = vmatprep.subr.mxu0 %v634
          %678 = vmatpush1.msra.mxu0 %v633
          %679 = vmatprep.subr.mxu0 %v636
          %680 = vmatpush1.msra.mxu0 %v635
          %681 = vmatprep.subr.mxu0 %v638
          %682 = vmatpush1.msra.mxu0 %v637
          %683 = vmatprep.subr.mxu0 %v640
          %684 = vmatpush1.msra.mxu0 %v639
          %685 = vmatprep.subr.mxu0 %v642
          %686 = vmatpush1.msra.mxu0 %v641
          %687 = vmatprep.subr.mxu0 %v644
          %688 = vmatpush1.msra.mxu0 %v643
          %689 = vmatprep.subr.mxu0 %v646
          %690 = vmatpush1.msra.mxu0 %v645
          %691 = vmatprep.subr.mxu0 %v648
          %692 = vmatpush1.msra.mxu0 %v647
          %693 = vmatprep.subr.mxu0 %v650
          %694 = vmatpush1.msra.mxu0 %v649
          %695 = vmatprep.subr.mxu0 %v652
          %696 = vmatpush1.msra.mxu0 %v651
          %697 = vmatprep.subr.mxu0 %v654
          %698 = vmatpush1.msra.mxu0 %v653
          %699 = vmatprep.subr.mxu0 %v656
          %700 = vmatpush1.msra.mxu0 %v655
          %701 = vmatprep.subr.mxu0 %v658
          %702 = vmatpush1.msra.mxu0 %v657
          %703 = vmatprep.subr.mxu0 %v660
          %704 = vmatpush1.msra.mxu0 %v659
          %705 = vmatprep.subr.mxu0 %v662
          %706 = vmatpush1.msra.mxu0 %v661
          %707 = vmatprep.subr.mxu0 %v664
          %708 = vmatpush1.msra.mxu0 %v663
          %709 = vmatprep.subr.mxu0 0.0
          %710 = vmatpush1.msra.mxu0 0.0
          %711 = vmatprep.subr.mxu0 0.0
          %712 = vmatpush1.msra.mxu0 0.0
          %713 = vmatprep.subr.mxu0 0.0
          %714 = vmatpush1.msra.mxu0 0.0
          %715 = vmatprep.subr.mxu0 0.0
          %716 = vmatpush1.msra.mxu0 0.0
          %717 = vmatprep.subr.mxu0 0.0
          %718 = vmatpush1.msra.mxu0 0.0
          %719 = vmatprep.subr.mxu0 0.0
          %720 = vmatpush1.msra.mxu0 0.0
          %721 = vmatprep.subr.mxu0 0.0
          %722 = vmatpush1.msra.mxu0 0.0
          %723 = vmatprep.subr.mxu0 0.0
          %724 = vmatpush1.msra.mxu0 0.0
          %725 = vmatprep.subr.mxu0 0.0
          %726 = vmatpush1.msra.mxu0 0.0
          %727 = vmatprep.subr.mxu0 0.0
          %728 = vmatpush1.msra.mxu0 0.0
          %729 = vmatprep.subr.mxu0 0.0
          %730 = vmatpush1.msra.mxu0 0.0
          %731 = vmatprep.subr.mxu0 0.0
          %732 = vmatpush1.msra.mxu0 0.0
          %733 = vmatprep.subr.mxu0 0.0
          %734 = vmatpush1.msra.mxu0 0.0
          %735 = vmatprep.subr.mxu0 0.0
          %736 = vmatpush1.msra.mxu0 0.0
          %737 = vmatprep.subr.mxu0 0.0
          %738 = vmatpush1.msra.mxu0 0.0
          %739 = vmatprep.subr.mxu0 0.0
          %740 = vmatpush1.msra.mxu0 0.0
          %741 = vmatprep.mubr.f32.mxu0 0.0
          %742 = vmatmul.mubr.f32.gmra.mrb[0].mxu0 %v631
          %v743 = vpop.f32.mrb[0].mxu0
          %v744 = vadd.f32 %v670, %v743
          %v745 = vpop.f32.mrb[0].mxu0
          %v746 = vadd.f32 %v674, %v745
          %747 = vmatprep.mubr.f32.mxu0 0.0
          %748 = vmatmul.mubr.f32.gmra.mrb[0].mxu0 %v632
          %v749 = vpop.f32.mrb[0].mxu0
          %v750 = vadd.f32 %v670, %v749
          %v751 = vpop.f32.mrb[0].mxu0
          %v752 = vadd.f32 %v674, %v751
          %753 = vdwg.mxu0
          %754 = vst [vmem:[#allocation2] sm:$0xff] %v744
          %755 = vst [vmem:[#allocation2 + $0x8] sm:$0xff] %v750
          %756 = vst [vmem:[#allocation3] sm:$0xff] %v746
          %757 = vst [vmem:[#allocation3 + $0x8] sm:$0xff] %v752
        $region96: #{tpu_custom_call.1} parent=67 // pred_fallthru
          _
        %v758 = vld [vmem:[%s533] sm:$0xff]
        %v759 = vld [vmem:[%s533 + $0x8] sm:$0xff]
        %v760 = vld [vmem:[#allocation11] sm:$0xff]
        %v761 = vld [vmem:[#allocation11 + $0x8] sm:$0xff]
        %v762 = vld [vmem:[#allocation11 + $0x10] sm:$0xff]
        %v763 = vld [vmem:[#allocation11 + $0x18] sm:$0xff]
        %v764 = vld [vmem:[#allocation11 + $0x20] sm:$0xff]
        %v765 = vld [vmem:[#allocation11 + $0x28] sm:$0xff]
        %v766 = vld [vmem:[#allocation11 + $0x30] sm:$0xff]
        %v767 = vld [vmem:[#allocation11 + $0x38] sm:$0xff]
        %v768 = vld [vmem:[#allocation11 + $0x40] sm:$0xff]
        %v769 = vld [vmem:[#allocation11 + $0x48] sm:$0xff]
        %v770 = vld [vmem:[#allocation11 + $0x50] sm:$0xff]
        %v771 = vld [vmem:[#allocation11 + $0x58] sm:$0xff]
        %v772 = vld [vmem:[#allocation11 + $0x60] sm:$0xff]
        %v773 = vld [vmem:[#allocation11 + $0x68] sm:$0xff]
        %v774 = vld [vmem:[#allocation11 + $0x70] sm:$0xff]
        %v775 = vld [vmem:[#allocation11 + $0x78] sm:$0xff]
        %v776 = vld [vmem:[%s621] sm:$0x1]
        %v778 = vlaneseq
        %v779 = vshrl.u32 %v778, 7
        %v780 = vsub.s32 0, %v779
        %v781 = vrot.slane %v776, %v780
        %783 = vmatprep.subr.mxu0 0.0
        %784 = vmatpush1.msra.mxu0 %v760
        %785 = vmatprep.subr.mxu0 0.0
        %786 = vmatpush1.msra.mxu0 %v761
        %787 = vmatprep.subr.mxu0 0.0
        %788 = vmatpush1.msra.mxu0 %v762
        %789 = vmatprep.subr.mxu0 0.0
        %790 = vmatpush1.msra.mxu0 %v763
        %791 = vmatprep.subr.mxu0 0.0
        %792 = vmatpush1.msra.mxu0 %v764
        %793 = vmatprep.subr.mxu0 0.0
        %794 = vmatpush1.msra.mxu0 %v765
        %795 = vmatprep.subr.mxu0 0.0
        %796 = vmatpush1.msra.mxu0 %v766
        %797 = vmatprep.subr.mxu0 0.0
        %798 = vmatpush1.msra.mxu0 %v767
        %799 = vmatprep.subr.mxu0 0.0
        %800 = vmatpush1.msra.mxu0 %v768
        %801 = vmatprep.subr.mxu0 0.0
        %802 = vmatpush1.msra.mxu0 %v769
        %803 = vmatprep.subr.mxu0 0.0
        %804 = vmatpush1.msra.mxu0 %v770
        %805 = vmatprep.subr.mxu0 0.0
        %806 = vmatpush1.msra.mxu0 %v771
        %807 = vmatprep.subr.mxu0 0.0
        %808 = vmatpush1.msra.mxu0 %v772
        %809 = vmatprep.subr.mxu0 0.0
        %810 = vmatpush1.msra.mxu0 %v773
        %811 = vmatprep.subr.mxu0 0.0
        %812 = vmatpush1.msra.mxu0 %v774
        %813 = vmatprep.subr.mxu0 0.0
        %814 = vmatpush1.msra.mxu0 %v775
        %815 = vmatprep.subr.mxu0 0.0
        %816 = vmatpush1.msra.mxu0 0.0
        %817 = vmatprep.subr.mxu0 0.0
        %818 = vmatpush1.msra.mxu0 0.0
        %819 = vmatprep.subr.mxu0 0.0
        %820 = vmatpush1.msra.mxu0 0.0
        %821 = vmatprep.subr.mxu0 0.0
        %822 = vmatpush1.msra.mxu0 0.0
        %823 = vmatprep.subr.mxu0 0.0
        %824 = vmatpush1.msra.mxu0 0.0
        %825 = vmatprep.subr.mxu0 0.0
        %826 = vmatpush1.msra.mxu0 0.0
        %827 = vmatprep.subr.mxu0 0.0
        %828 = vmatpush1.msra.mxu0 0.0
        %829 = vmatprep.subr.mxu0 0.0
        %830 = vmatpush1.msra.mxu0 0.0
        %831 = vmatprep.subr.mxu0 0.0
        %832 = vmatpush1.msra.mxu0 0.0
        %833 = vmatprep.subr.mxu0 0.0
        %834 = vmatpush1.msra.mxu0 0.0
        %835 = vmatprep.subr.mxu0 0.0
        %836 = vmatpush1.msra.mxu0 0.0
        %837 = vmatprep.subr.mxu0 0.0
        %838 = vmatpush1.msra.mxu0 0.0
        %839 = vmatprep.subr.mxu0 0.0
        %840 = vmatpush1.msra.mxu0 0.0
        %841 = vmatprep.subr.mxu0 0.0
        %842 = vmatpush1.msra.mxu0 0.0
        %843 = vmatprep.subr.mxu0 0.0
        %844 = vmatpush1.msra.mxu0 0.0
        %845 = vmatprep.subr.mxu0 0.0
        %846 = vmatpush1.msra.mxu0 0.0
        %847 = vmatprep.mubr.f32.mxu0 0.0
        %848 = vmatmul.mubr.f32.gmra.mrb[0].mxu0 %v758
        %v849 = vpop.f32.mrb[0].mxu0
        %v850 = vadd.f32 %v781, %v849
        %v851 = vpop.f32.mrb[0].mxu0
        %852 = vmatprep.mubr.f32.mxu0 0.0
        %853 = vmatmul.mubr.f32.gmra.mrb[0].mxu0 %v759
        %v854 = vpop.f32.mrb[0].mxu0
        %v855 = vadd.f32 %v781, %v854
        %v856 = vpop.f32.mrb[0].mxu0
        %857 = vdwg.mxu0
        %v858 = vld [vmem:[#allocation10] sm:$0xff]
        %v859 = vld [vmem:[#allocation10 + $0x8] sm:$0xff]
        %v860 = vld [vmem:[%s618] sm:$0x1]
        %v862 = vlaneseq
        %v863 = vshrl.u32 %v862, 7
        %v864 = vsub.s32 0, %v863
        %v865 = vrot.slane %v860, %v864
        %v867 = vadd.f32 %v858, %v865
        %v868 = vadd.f32 %v859, %v865
        %v869 = vld [vmem:[#allocation2] sm:$0xff]
        %v870 = vld [vmem:[#allocation2 + $0x8] sm:$0xff]
        %v871 = vld [vmem:[#allocation3] sm:$0xff]
        %v872 = vld [vmem:[#allocation3 + $0x8] sm:$0xff]
        %vm873 = vcmask 261120
        %v875 = vsel %vm873, %v850, 0
        %v878 = vsel %vm873, %v855, 0
        %v881 = vsel %vm873, %v869, 0
        %v884 = vsel %vm873, %v870, 0
        %886 = vmatprep.subr.mxu0 0.0
        %887 = vmatpush1.xpose.msra.mxu0 %v881
        %888 = vmatprep.subr.mxu0 0.0
        %889 = vmatpush1.xpose.msra.mxu0 %v884
        %890 = vmatprep.subr.mxu0 0.0
        %891 = vmatpush1.xpose.msra.mxu0 0.0
        %892 = vmatprep.subr.mxu0 0.0
        %893 = vmatpush1.xpose.msra.mxu0 0.0
        %894 = vmatprep.subr.mxu0 0.0
        %895 = vmatpush1.xpose.msra.mxu0 0.0
        %896 = vmatprep.subr.mxu0 0.0
        %897 = vmatpush1.xpose.msra.mxu0 0.0
        %898 = vmatprep.subr.mxu0 0.0
        %899 = vmatpush1.xpose.msra.mxu0 0.0
        %900 = vmatprep.subr.mxu0 0.0
        %901 = vmatpush1.xpose.msra.mxu0 0.0
        %902 = vmatprep.subr.mxu0 0.0
        %903 = vmatpush1.xpose.msra.mxu0 0.0
        %904 = vmatprep.subr.mxu0 0.0
        %905 = vmatpush1.xpose.msra.mxu0 0.0
        %906 = vmatprep.subr.mxu0 0.0
        %907 = vmatpush1.xpose.msra.mxu0 0.0
        %908 = vmatprep.subr.mxu0 0.0
        %909 = vmatpush1.xpose.msra.mxu0 0.0
        %910 = vmatprep.subr.mxu0 0.0
        %911 = vmatpush1.xpose.msra.mxu0 0.0
        %912 = vmatprep.subr.mxu0 0.0
        %913 = vmatpush1.xpose.msra.mxu0 0.0
        %914 = vmatprep.subr.mxu0 0.0
        %915 = vmatpush1.xpose.msra.mxu0 0.0
        %916 = vmatprep.subr.mxu0 0.0
        %917 = vmatpush1.xpose.msra.mxu0 0.0
        %918 = vmatprep.subr.mxu0 0.0
        %919 = vmatpush1.xpose.msra.mxu0 0.0
        %920 = vmatprep.subr.mxu0 0.0
        %921 = vmatpush1.xpose.msra.mxu0 0.0
        %922 = vmatprep.subr.mxu0 0.0
        %923 = vmatpush1.xpose.msra.mxu0 0.0
        %924 = vmatprep.subr.mxu0 0.0
        %925 = vmatpush1.xpose.msra.mxu0 0.0
        %926 = vmatprep.subr.mxu0 0.0
        %927 = vmatpush1.xpose.msra.mxu0 0.0
        %928 = vmatprep.subr.mxu0 0.0
        %929 = vmatpush1.xpose.msra.mxu0 0.0
        %930 = vmatprep.subr.mxu0 0.0
        %931 = vmatpush1.xpose.msra.mxu0 0.0
        %932 = vmatprep.subr.mxu0 0.0
        %933 = vmatpush1.xpose.msra.mxu0 0.0
        %934 = vmatprep.subr.mxu0 0.0
        %935 = vmatpush1.xpose.msra.mxu0 0.0
        %936 = vmatprep.subr.mxu0 0.0
        %937 = vmatpush1.xpose.msra.mxu0 0.0
        %938 = vmatprep.subr.mxu0 0.0
        %939 = vmatpush1.xpose.msra.mxu0 0.0
        %940 = vmatprep.subr.mxu0 0.0
        %941 = vmatpush1.xpose.msra.mxu0 0.0
        %942 = vmatprep.subr.mxu0 0.0
        %943 = vmatpush1.xpose.msra.mxu0 0.0
        %944 = vmatprep.subr.mxu0 0.0
        %945 = vmatpush1.xpose.msra.mxu0 0.0
        %946 = vmatprep.subr.mxu0 0.0
        %947 = vmatpush1.xpose.msra.mxu0 0.0
        %948 = vmatprep.subr.mxu0 0.0
        %949 = vmatpush1.xpose.msra.mxu0 0.0
        %950 = vmatprep.mubr.f32.mxu0 0.0
        %951 = vmatmul.mubr.f32.gmra.mrb[0].mxu0 %v875
        %v952 = vpop.f32.mrb[0].mxu0
        %v953 = vadd.f32 %v867, %v952
        %v954 = vpop.f32.mrb[0].mxu0
        %955 = vmatprep.mubr.f32.mxu0 0.0
        %956 = vmatmul.mubr.f32.gmra.mrb[0].mxu0 %v878
        %v957 = vpop.f32.mrb[0].mxu0
        %v958 = vadd.f32 %v868, %v957
        %v959 = vpop.f32.mrb[0].mxu0
        %960 = vdwg.mxu0
        %vm961 = vcmask 130048
        %v962 = vsel %vm961, %v953, -inf
        %963 = vmax.xlane.f32.xlu0 %v962
        %v964 = vpop.xlane.xlu0 %963
        %v965 = vsel %vm961, %v958, -inf
        %966 = vmax.xlane.f32.xlu0 %v965
        %v967 = vpop.xlane.xlu0 %966
        %v968 = vsub.f32 %v953, %v964
        %v969 = vsub.f32 %v958, %v967
        %v970 = vmul.f32 %v968, 1.442695
        %v971 = vpow.pop %v970
        %v972 = vmul.f32 %v969, 1.442695
        %v973 = vpow.pop %v972
        %v974 = vsel %vm961, %v971, 0.0
        %975 = vadd.xlane.f32.xlu0 %v974
        %v976 = vpop.xlane.xlu0 %975
        %v977 = vsel %vm961, %v973, 0.0
        %978 = vadd.xlane.f32.xlu0 %v977
        %v979 = vpop.xlane.xlu0 %978
        %v981 = vsel %vm961, %v971, 0
        %v984 = vsel %vm961, %v973, 0
        %986 = vmatprep.subr.mxu0 0.0
        %987 = vmatpush1.msra.mxu0 %v871
        %988 = vmatprep.subr.mxu0 0.0
        %989 = vmatpush1.msra.mxu0 %v872
        %990 = vmatprep.subr.mxu0 0.0
        %991 = vmatpush1.msra.mxu0 0.0
        %992 = vmatprep.subr.mxu0 0.0
        %993 = vmatpush1.msra.mxu0 0.0
        %994 = vmatprep.subr.mxu0 0.0
        %995 = vmatpush1.msra.mxu0 0.0
        %996 = vmatprep.subr.mxu0 0.0
        %997 = vmatpush1.msra.mxu0 0.0
        %998 = vmatprep.subr.mxu0 0.0
        %999 = vmatpush1.msra.mxu0 0.0
        %1000 = vmatprep.subr.mxu0 0.0
        %1001 = vmatpush1.msra.mxu0 0.0
        %1002 = vmatprep.subr.mxu0 0.0
        %1003 = vmatpush1.msra.mxu0 0.0
        %1004 = vmatprep.subr.mxu0 0.0
        %1005 = vmatpush1.msra.mxu0 0.0
        %1006 = vmatprep.subr.mxu0 0.0
        %1007 = vmatpush1.msra.mxu0 0.0
        %1008 = vmatprep.subr.mxu0 0.0
        %1009 = vmatpush1.msra.mxu0 0.0
        %1010 = vmatprep.subr.mxu0 0.0
        %1011 = vmatpush1.msra.mxu0 0.0
        %1012 = vmatprep.subr.mxu0 0.0
        %1013 = vmatpush1.msra.mxu0 0.0
        %1014 = vmatprep.subr.mxu0 0.0
        %1015 = vmatpush1.msra.mxu0 0.0
        %1016 = vmatprep.subr.mxu0 0.0
        %1017 = vmatpush1.msra.mxu0 0.0
        %1018 = vmatprep.subr.mxu0 0.0
        %1019 = vmatpush1.msra.mxu0 0.0
        %1020 = vmatprep.subr.mxu0 0.0
        %1021 = vmatpush1.msra.mxu0 0.0
        %1022 = vmatprep.subr.mxu0 0.0
        %1023 = vmatpush1.msra.mxu0 0.0
        %1024 = vmatprep.subr.mxu0 0.0
        %1025 = vmatpush1.msra.mxu0 0.0
        %1026 = vmatprep.subr.mxu0 0.0
        %1027 = vmatpush1.msra.mxu0 0.0
        %1028 = vmatprep.subr.mxu0 0.0
        %1029 = vmatpush1.msra.mxu0 0.0
        %1030 = vmatprep.subr.mxu0 0.0
        %1031 = vmatpush1.msra.mxu0 0.0
        %1032 = vmatprep.subr.mxu0 0.0
        %1033 = vmatpush1.msra.mxu0 0.0
        %1034 = vmatprep.subr.mxu0 0.0
        %1035 = vmatpush1.msra.mxu0 0.0
        %1036 = vmatprep.subr.mxu0 0.0
        %1037 = vmatpush1.msra.mxu0 0.0
        %1038 = vmatprep.subr.mxu0 0.0
        %1039 = vmatpush1.msra.mxu0 0.0
        %1040 = vmatprep.subr.mxu0 0.0
        %1041 = vmatpush1.msra.mxu0 0.0
        %1042 = vmatprep.subr.mxu0 0.0
        %1043 = vmatpush1.msra.mxu0 0.0
        %1044 = vmatprep.subr.mxu0 0.0
        %1045 = vmatpush1.msra.mxu0 0.0
        %1046 = vmatprep.subr.mxu0 0.0
        %1047 = vmatpush1.msra.mxu0 0.0
        %1048 = vmatprep.subr.mxu0 0.0
        %1049 = vmatpush1.msra.mxu0 0.0
        %1050 = vmatprep.mubr.f32.mxu0 0.0
        %1051 = vmatmul.mubr.f32.gmra.mrb[0].mxu0 %v981
        %v1052 = vpop.f32.mrb[0].mxu0
        %v1053 = vadd.f32 0.0, %v1052
        %v1054 = vpop.f32.mrb[0].mxu0
        %1055 = vmatprep.mubr.f32.mxu0 0.0
        %1056 = vmatmul.mubr.f32.gmra.mrb[0].mxu0 %v984
        %v1057 = vpop.f32.mrb[0].mxu0
        %v1058 = vadd.f32 0.0, %v1057
        %v1059 = vpop.f32.mrb[0].mxu0
        %1060 = vdwg.mxu0
        %v1061 = vrcp.pop %v976
        %v1062 = vmul.f32 1.0, %v1061
        %v1063 = vrcp.pop %v979
        %v1064 = vmul.f32 1.0, %v1063
        %v1065 = vmul.f32 %v1053, %v1062
        %v1066 = vmul.f32 %v1058, %v1064
        %1067 = vrot.lane.b32.xlu0 %v850, 96
        %v1068 = vpop.permute.xlu0 %1067
        %1069 = vrot.lane.b32.xlu0 %v855, 96
        %v1070 = vpop.permute.xlu0 %1069
        %1071 = vrot.lane.b32.xlu0 %v869, 96
        %v1072 = vpop.permute.xlu0 %1071
        %1073 = vrot.lane.b32.xlu0 %v870, 96
        %v1074 = vpop.permute.xlu0 %1073
        %v1075 = vsel %vm873, %v1068, 0
        %v1077 = vsel %vm873, %v1070, 0
        %v1079 = vsel %vm873, %v1072, 0
        %v1081 = vsel %vm873, %v1074, 0
        %1083 = vmatprep.subr.mxu0 0.0
        %1084 = vmatpush1.xpose.msra.mxu0 %v1079
        %1085 = vmatprep.subr.mxu0 0.0
        %1086 = vmatpush1.xpose.msra.mxu0 %v1081
        %1087 = vmatprep.subr.mxu0 0.0
        %1088 = vmatpush1.xpose.msra.mxu0 0.0
        %1089 = vmatprep.subr.mxu0 0.0
        %1090 = vmatpush1.xpose.msra.mxu0 0.0
        %1091 = vmatprep.subr.mxu0 0.0
        %1092 = vmatpush1.xpose.msra.mxu0 0.0
        %1093 = vmatprep.subr.mxu0 0.0
        %1094 = vmatpush1.xpose.msra.mxu0 0.0
        %1095 = vmatprep.subr.mxu0 0.0
        %1096 = vmatpush1.xpose.msra.mxu0 0.0
        %1097 = vmatprep.subr.mxu0 0.0
        %1098 = vmatpush1.xpose.msra.mxu0 0.0
        %1099 = vmatprep.subr.mxu0 0.0
        %1100 = vmatpush1.xpose.msra.mxu0 0.0
        %1101 = vmatprep.subr.mxu0 0.0
        %1102 = vmatpush1.xpose.msra.mxu0 0.0
        %1103 = vmatprep.subr.mxu0 0.0
        %1104 = vmatpush1.xpose.msra.mxu0 0.0
        %1105 = vmatprep.subr.mxu0 0.0
        %1106 = vmatpush1.xpose.msra.mxu0 0.0
        %1107 = vmatprep.subr.mxu0 0.0
        %1108 = vmatpush1.xpose.msra.mxu0 0.0
        %1109 = vmatprep.subr.mxu0 0.0
        %1110 = vmatpush1.xpose.msra.mxu0 0.0
        %1111 = vmatprep.subr.mxu0 0.0
        %1112 = vmatpush1.xpose.msra.mxu0 0.0
        %1113 = vmatprep.subr.mxu0 0.0
        %1114 = vmatpush1.xpose.msra.mxu0 0.0
        %1115 = vmatprep.subr.mxu0 0.0
        %1116 = vmatpush1.xpose.msra.mxu0 0.0
        %1117 = vmatprep.subr.mxu0 0.0
        %1118 = vmatpush1.xpose.msra.mxu0 0.0
        %1119 = vmatprep.subr.mxu0 0.0
        %1120 = vmatpush1.xpose.msra.mxu0 0.0
        %1121 = vmatprep.subr.mxu0 0.0
        %1122 = vmatpush1.xpose.msra.mxu0 0.0
        %1123 = vmatprep.subr.mxu0 0.0
        %1124 = vmatpush1.xpose.msra.mxu0 0.0
        %1125 = vmatprep.subr.mxu0 0.0
        %1126 = vmatpush1.xpose.msra.mxu0 0.0
        %1127 = vmatprep.subr.mxu0 0.0
        %1128 = vmatpush1.xpose.msra.mxu0 0.0
        %1129 = vmatprep.subr.mxu0 0.0
        %1130 = vmatpush1.xpose.msra.mxu0 0.0
        %1131 = vmatprep.subr.mxu0 0.0
        %1132 = vmatpush1.xpose.msra.mxu0 0.0
        %1133 = vmatprep.subr.mxu0 0.0
        %1134 = vmatpush1.xpose.msra.mxu0 0.0
        %1135 = vmatprep.subr.mxu0 0.0
        %1136 = vmatpush1.xpose.msra.mxu0 0.0
        %1137 = vmatprep.subr.mxu0 0.0
        %1138 = vmatpush1.xpose.msra.mxu0 0.0
        %1139 = vmatprep.subr.mxu0 0.0
        %1140 = vmatpush1.xpose.msra.mxu0 0.0
        %1141 = vmatprep.subr.mxu0 0.0
        %1142 = vmatpush1.xpose.msra.mxu0 0.0
        %1143 = vmatprep.subr.mxu0 0.0
        %1144 = vmatpush1.xpose.msra.mxu0 0.0
        %1145 = vmatprep.subr.mxu0 0.0
        %1146 = vmatpush1.xpose.msra.mxu0 0.0
        %1147 = vmatprep.mubr.f32.mxu0 0.0
        %1148 = vmatmul.mubr.f32.gmra.mrb[0].mxu0 %v1075
        %v1149 = vpop.f32.mrb[0].mxu0
        %v1150 = vadd.f32 %v867, %v1149
        %v1151 = vpop.f32.mrb[0].mxu0
        %1152 = vmatprep.mubr.f32.mxu0 0.0
        %1153 = vmatmul.mubr.f32.gmra.mrb[0].mxu0 %v1077
        %v1154 = vpop.f32.mrb[0].mxu0
        %v1155 = vadd.f32 %v868, %v1154
        %v1156 = vpop.f32.mrb[0].mxu0
        %1157 = vdwg.mxu0
        %v1158 = vsel %vm961, %v1150, -inf
        %1159 = vmax.xlane.f32.xlu0 %v1158
        %v1160 = vpop.xlane.xlu0 %1159
        %v1161 = vsel %vm961, %v1155, -inf
        %1162 = vmax.xlane.f32.xlu0 %v1161
        %v1163 = vpop.xlane.xlu0 %1162
        %v1164 = vsub.f32 %v1150, %v1160
        %v1165 = vsub.f32 %v1155, %v1163
        %v1166 = vmul.f32 %v1164, 1.442695
        %v1167 = vpow.pop %v1166
        %v1168 = vmul.f32 %v1165, 1.442695
        %v1169 = vpow.pop %v1168
        %v1170 = vsel %vm961, %v1167, 0.0
        %1171 = vadd.xlane.f32.xlu0 %v1170
        %v1172 = vpop.xlane.xlu0 %1171
        %v1173 = vsel %vm961, %v1169, 0.0
        %1174 = vadd.xlane.f32.xlu0 %v1173
        %v1175 = vpop.xlane.xlu0 %1174
        %1178 = vrot.lane.b32.xlu0 %v871, 96
        %v1179 = vpop.permute.xlu0 %1178
        %1180 = vrot.lane.b32.xlu0 %v872, 96
        %v1181 = vpop.permute.xlu0 %1180
        %v1185 = vsel %vm961, %v1167, 0
        %v1188 = vsel %vm961, %v1169, 0
        %1190 = vmatprep.subr.mxu0 0.0
        %1191 = vmatpush1.msra.mxu0 %v1179
        %1192 = vmatprep.subr.mxu0 0.0
        %1193 = vmatpush1.msra.mxu0 %v1181
        %1194 = vmatprep.subr.mxu0 0.0
        %1195 = vmatpush1.msra.mxu0 0.0
        %1196 = vmatprep.subr.mxu0 0.0
        %1197 = vmatpush1.msra.mxu0 0.0
        %1198 = vmatprep.subr.mxu0 0.0
        %1199 = vmatpush1.msra.mxu0 0.0
        %1200 = vmatprep.subr.mxu0 0.0
        %1201 = vmatpush1.msra.mxu0 0.0
        %1202 = vmatprep.subr.mxu0 0.0
        %1203 = vmatpush1.msra.mxu0 0.0
        %1204 = vmatprep.subr.mxu0 0.0
        %1205 = vmatpush1.msra.mxu0 0.0
        %1206 = vmatprep.subr.mxu0 0.0
        %1207 = vmatpush1.msra.mxu0 0.0
        %1208 = vmatprep.subr.mxu0 0.0
        %1209 = vmatpush1.msra.mxu0 0.0
        %1210 = vmatprep.subr.mxu0 0.0
        %1211 = vmatpush1.msra.mxu0 0.0
        %1212 = vmatprep.subr.mxu0 0.0
        %1213 = vmatpush1.msra.mxu0 0.0
        %1214 = vmatprep.subr.mxu0 0.0
        %1215 = vmatpush1.msra.mxu0 0.0
        %1216 = vmatprep.subr.mxu0 0.0
        %1217 = vmatpush1.msra.mxu0 0.0
        %1218 = vmatprep.subr.mxu0 0.0
        %1219 = vmatpush1.msra.mxu0 0.0
        %1220 = vmatprep.subr.mxu0 0.0
        %1221 = vmatpush1.msra.mxu0 0.0
        %1222 = vmatprep.subr.mxu0 0.0
        %1223 = vmatpush1.msra.mxu0 0.0
        %1224 = vmatprep.subr.mxu0 0.0
        %1225 = vmatpush1.msra.mxu0 0.0
        %1226 = vmatprep.subr.mxu0 0.0
        %1227 = vmatpush1.msra.mxu0 0.0
        %1228 = vmatprep.subr.mxu0 0.0
        %1229 = vmatpush1.msra.mxu0 0.0
        %1230 = vmatprep.subr.mxu0 0.0
        %1231 = vmatpush1.msra.mxu0 0.0
        %1232 = vmatprep.subr.mxu0 0.0
        %1233 = vmatpush1.msra.mxu0 0.0
        %1234 = vmatprep.subr.mxu0 0.0
        %1235 = vmatpush1.msra.mxu0 0.0
        %1236 = vmatprep.subr.mxu0 0.0
        %1237 = vmatpush1.msra.mxu0 0.0
        %1238 = vmatprep.subr.mxu0 0.0
        %1239 = vmatpush1.msra.mxu0 0.0
        %1240 = vmatprep.subr.mxu0 0.0
        %1241 = vmatpush1.msra.mxu0 0.0
        %1242 = vmatprep.subr.mxu0 0.0
        %1243 = vmatpush1.msra.mxu0 0.0
        %1244 = vmatprep.subr.mxu0 0.0
        %1245 = vmatpush1.msra.mxu0 0.0
        %1246 = vmatprep.subr.mxu0 0.0
        %1247 = vmatpush1.msra.mxu0 0.0
        %1248 = vmatprep.subr.mxu0 0.0
        %1249 = vmatpush1.msra.mxu0 0.0
        %1250 = vmatprep.subr.mxu0 0.0
        %1251 = vmatpush1.msra.mxu0 0.0
        %1252 = vmatprep.subr.mxu0 0.0
        %1253 = vmatpush1.msra.mxu0 0.0
        %1254 = vmatprep.mubr.f32.mxu0 0.0
        %1255 = vmatmul.mubr.f32.gmra.mrb[0].mxu0 %v1185
        %v1256 = vpop.f32.mrb[0].mxu0
        %v1257 = vadd.f32 0.0, %v1256
        %v1258 = vpop.f32.mrb[0].mxu0
        %1259 = vmatprep.mubr.f32.mxu0 0.0
        %1260 = vmatmul.mubr.f32.gmra.mrb[0].mxu0 %v1188
        %v1261 = vpop.f32.mrb[0].mxu0
        %v1262 = vadd.f32 0.0, %v1261
        %v1263 = vpop.f32.mrb[0].mxu0
        %1264 = vdwg.mxu0
        %v1265 = vrcp.pop %v1172
        %v1266 = vmul.f32 1.0, %v1265
        %v1267 = vrcp.pop %v1175
        %v1268 = vmul.f32 1.0, %v1267
        %v1269 = vmul.f32 %v1257, %v1266
        %v1270 = vmul.f32 %v1262, %v1268
        %1271 = vrot.lane.b32.xlu0 %v850, 64
        %v1272 = vpop.permute.xlu0 %1271
        %1273 = vrot.lane.b32.xlu0 %v855, 64
        %v1274 = vpop.permute.xlu0 %1273
        %1275 = vrot.lane.b32.xlu0 %v869, 64
        %v1276 = vpop.permute.xlu0 %1275
        %1277 = vrot.lane.b32.xlu0 %v870, 64
        %v1278 = vpop.permute.xlu0 %1277
        %v1279 = vsel %vm873, %v1272, 0
        %v1281 = vsel %vm873, %v1274, 0
        %v1283 = vsel %vm873, %v1276, 0
        %v1285 = vsel %vm873, %v1278, 0
        %1287 = vmatprep.subr.mxu0 0.0
        %1288 = vmatpush1.xpose.msra.mxu0 %v1283
        %1289 = vmatprep.subr.mxu0 0.0
        %1290 = vmatpush1.xpose.msra.mxu0 %v1285
        %1291 = vmatprep.subr.mxu0 0.0
        %1292 = vmatpush1.xpose.msra.mxu0 0.0
        %1293 = vmatprep.subr.mxu0 0.0
        %1294 = vmatpush1.xpose.msra.mxu0 0.0
        %1295 = vmatprep.subr.mxu0 0.0
        %1296 = vmatpush1.xpose.msra.mxu0 0.0
        %1297 = vmatprep.subr.mxu0 0.0
        %1298 = vmatpush1.xpose.msra.mxu0 0.0
        %1299 = vmatprep.subr.mxu0 0.0
        %1300 = vmatpush1.xpose.msra.mxu0 0.0
        %1301 = vmatprep.subr.mxu0 0.0
        %1302 = vmatpush1.xpose.msra.mxu0 0.0
        %1303 = vmatprep.subr.mxu0 0.0
        %1304 = vmatpush1.xpose.msra.mxu0 0.0
        %1305 = vmatprep.subr.mxu0 0.0
        %1306 = vmatpush1.xpose.msra.mxu0 0.0
        %1307 = vmatprep.subr.mxu0 0.0
        %1308 = vmatpush1.xpose.msra.mxu0 0.0
        %1309 = vmatprep.subr.mxu0 0.0
        %1310 = vmatpush1.xpose.msra.mxu0 0.0
        %1311 = vmatprep.subr.mxu0 0.0
        %1312 = vmatpush1.xpose.msra.mxu0 0.0
        %1313 = vmatprep.subr.mxu0 0.0
        %1314 = vmatpush1.xpose.msra.mxu0 0.0
        %1315 = vmatprep.subr.mxu0 0.0
        %1316 = vmatpush1.xpose.msra.mxu0 0.0
        %1317 = vmatprep.subr.mxu0 0.0
        %1318 = vmatpush1.xpose.msra.mxu0 0.0
        %1319 = vmatprep.subr.mxu0 0.0
        %1320 = vmatpush1.xpose.msra.mxu0 0.0
        %1321 = vmatprep.subr.mxu0 0.0
        %1322 = vmatpush1.xpose.msra.mxu0 0.0
        %1323 = vmatprep.subr.mxu0 0.0
        %1324 = vmatpush1.xpose.msra.mxu0 0.0
        %1325 = vmatprep.subr.mxu0 0.0
        %1326 = vmatpush1.xpose.msra.mxu0 0.0
        %1327 = vmatprep.subr.mxu0 0.0
        %1328 = vmatpush1.xpose.msra.mxu0 0.0
        %1329 = vmatprep.subr.mxu0 0.0
        %1330 = vmatpush1.xpose.msra.mxu0 0.0
        %1331 = vmatprep.subr.mxu0 0.0
        %1332 = vmatpush1.xpose.msra.mxu0 0.0
        %1333 = vmatprep.subr.mxu0 0.0
        %1334 = vmatpush1.xpose.msra.mxu0 0.0
        %1335 = vmatprep.subr.mxu0 0.0
        %1336 = vmatpush1.xpose.msra.mxu0 0.0
        %1337 = vmatprep.subr.mxu0 0.0
        %1338 = vmatpush1.xpose.msra.mxu0 0.0
        %1339 = vmatprep.subr.mxu0 0.0
        %1340 = vmatpush1.xpose.msra.mxu0 0.0
        %1341 = vmatprep.subr.mxu0 0.0
        %1342 = vmatpush1.xpose.msra.mxu0 0.0
        %1343 = vmatprep.subr.mxu0 0.0
        %1344 = vmatpush1.xpose.msra.mxu0 0.0
        %1345 = vmatprep.subr.mxu0 0.0
        %1346 = vmatpush1.xpose.msra.mxu0 0.0
        %1347 = vmatprep.subr.mxu0 0.0
        %1348 = vmatpush1.xpose.msra.mxu0 0.0
        %1349 = vmatprep.subr.mxu0 0.0
        %1350 = vmatpush1.xpose.msra.mxu0 0.0
        %1351 = vmatprep.mubr.f32.mxu0 0.0
        %1352 = vmatmul.mubr.f32.gmra.mrb[0].mxu0 %v1279
        %v1353 = vpop.f32.mrb[0].mxu0
        %v1354 = vadd.f32 %v867, %v1353
        %v1355 = vpop.f32.mrb[0].mxu0
        %1356 = vmatprep.mubr.f32.mxu0 0.0
        %1357 = vmatmul.mubr.f32.gmra.mrb[0].mxu0 %v1281
        %v1358 = vpop.f32.mrb[0].mxu0
        %v1359 = vadd.f32 %v868, %v1358
        %v1360 = vpop.f32.mrb[0].mxu0
        %1361 = vdwg.mxu0
        %v1362 = vsel %vm961, %v1354, -inf
        %1363 = vmax.xlane.f32.xlu0 %v1362
        %v1364 = vpop.xlane.xlu0 %1363
        %v1365 = vsel %vm961, %v1359, -inf
        %1366 = vmax.xlane.f32.xlu0 %v1365
        %v1367 = vpop.xlane.xlu0 %1366
        %v1368 = vsub.f32 %v1354, %v1364
        %v1369 = vsub.f32 %v1359, %v1367
        %v1370 = vmul.f32 %v1368, 1.442695
        %v1371 = vpow.pop %v1370
        %v1372 = vmul.f32 %v1369, 1.442695
        %v1373 = vpow.pop %v1372
        %v1374 = vsel %vm961, %v1371, 0.0
        %1375 = vadd.xlane.f32.xlu0 %v1374
        %v1376 = vpop.xlane.xlu0 %1375
        %v1377 = vsel %vm961, %v1373, 0.0
        %1378 = vadd.xlane.f32.xlu0 %v1377
        %v1379 = vpop.xlane.xlu0 %1378
        %1380 = vrot.lane.b32.xlu0 %v871, 64
        %v1381 = vpop.permute.xlu0 %1380
        %1382 = vrot.lane.b32.xlu0 %v872, 64
        %v1383 = vpop.permute.xlu0 %1382
        %v1387 = vsel %vm961, %v1371, 0
        %v1390 = vsel %vm961, %v1373, 0
        %1392 = vmatprep.subr.mxu0 0.0
        %1393 = vmatpush1.msra.mxu0 %v1381
        %1394 = vmatprep.subr.mxu0 0.0
        %1395 = vmatpush1.msra.mxu0 %v1383
        %1396 = vmatprep.subr.mxu0 0.0
        %1397 = vmatpush1.msra.mxu0 0.0
        %1398 = vmatprep.subr.mxu0 0.0
        %1399 = vmatpush1.msra.mxu0 0.0
        %1400 = vmatprep.subr.mxu0 0.0
        %1401 = vmatpush1.msra.mxu0 0.0
        %1402 = vmatprep.subr.mxu0 0.0
        %1403 = vmatpush1.msra.mxu0 0.0
        %1404 = vmatprep.subr.mxu0 0.0
        %1405 = vmatpush1.msra.mxu0 0.0
        %1406 = vmatprep.subr.mxu0 0.0
        %1407 = vmatpush1.msra.mxu0 0.0
        %1408 = vmatprep.subr.mxu0 0.0
        %1409 = vmatpush1.msra.mxu0 0.0
        %1410 = vmatprep.subr.mxu0 0.0
        %1411 = vmatpush1.msra.mxu0 0.0
        %1412 = vmatprep.subr.mxu0 0.0
        %1413 = vmatpush1.msra.mxu0 0.0
        %1414 = vmatprep.subr.mxu0 0.0
        %1415 = vmatpush1.msra.mxu0 0.0
        %1416 = vmatprep.subr.mxu0 0.0
        %1417 = vmatpush1.msra.mxu0 0.0
        %1418 = vmatprep.subr.mxu0 0.0
        %1419 = vmatpush1.msra.mxu0 0.0
        %1420 = vmatprep.subr.mxu0 0.0
        %1421 = vmatpush1.msra.mxu0 0.0
        %1422 = vmatprep.subr.mxu0 0.0
        %1423 = vmatpush1.msra.mxu0 0.0
        %1424 = vmatprep.subr.mxu0 0.0
        %1425 = vmatpush1.msra.mxu0 0.0
        %1426 = vmatprep.subr.mxu0 0.0
        %1427 = vmatpush1.msra.mxu0 0.0
        %1428 = vmatprep.subr.mxu0 0.0
        %1429 = vmatpush1.msra.mxu0 0.0
        %1430 = vmatprep.subr.mxu0 0.0
        %1431 = vmatpush1.msra.mxu0 0.0
        %1432 = vmatprep.subr.mxu0 0.0
        %1433 = vmatpush1.msra.mxu0 0.0
        %1434 = vmatprep.subr.mxu0 0.0
        %1435 = vmatpush1.msra.mxu0 0.0
        %1436 = vmatprep.subr.mxu0 0.0
        %1437 = vmatpush1.msra.mxu0 0.0
        %1438 = vmatprep.subr.mxu0 0.0
        %1439 = vmatpush1.msra.mxu0 0.0
        %1440 = vmatprep.subr.mxu0 0.0
        %1441 = vmatpush1.msra.mxu0 0.0
        %1442 = vmatprep.subr.mxu0 0.0
        %1443 = vmatpush1.msra.mxu0 0.0
        %1444 = vmatprep.subr.mxu0 0.0
        %1445 = vmatpush1.msra.mxu0 0.0
        %1446 = vmatprep.subr.mxu0 0.0
        %1447 = vmatpush1.msra.mxu0 0.0
        %1448 = vmatprep.subr.mxu0 0.0
        %1449 = vmatpush1.msra.mxu0 0.0
        %1450 = vmatprep.subr.mxu0 0.0
        %1451 = vmatpush1.msra.mxu0 0.0
        %1452 = vmatprep.subr.mxu0 0.0
        %1453 = vmatpush1.msra.mxu0 0.0
        %1454 = vmatprep.subr.mxu0 0.0
        %1455 = vmatpush1.msra.mxu0 0.0
        %1456 = vmatprep.mubr.f32.mxu0 0.0
        %1457 = vmatmul.mubr.f32.gmra.mrb[0].mxu0 %v1387
        %v1458 = vpop.f32.mrb[0].mxu0
        %v1459 = vadd.f32 0.0, %v1458
        %v1460 = vpop.f32.mrb[0].mxu0
        %1461 = vmatprep.mubr.f32.mxu0 0.0
        %1462 = vmatmul.mubr.f32.gmra.mrb[0].mxu0 %v1390
        %v1463 = vpop.f32.mrb[0].mxu0
        %v1464 = vadd.f32 0.0, %v1463
        %v1465 = vpop.f32.mrb[0].mxu0
        %1466 = vdwg.mxu0
        %v1467 = vrcp.pop %v1376
        %v1468 = vmul.f32 1.0, %v1467
        %v1469 = vrcp.pop %v1379
        %v1470 = vmul.f32 1.0, %v1469
        %v1471 = vmul.f32 %v1459, %v1468
        %v1472 = vmul.f32 %v1464, %v1470
        %1473 = vrot.lane.b32.xlu0 %v850, 32
        %v1474 = vpop.permute.xlu0 %1473
        %1475 = vrot.lane.b32.xlu0 %v855, 32
        %v1476 = vpop.permute.xlu0 %1475
        %1477 = vrot.lane.b32.xlu0 %v869, 32
        %v1478 = vpop.permute.xlu0 %1477
        %1479 = vrot.lane.b32.xlu0 %v870, 32
        %v1480 = vpop.permute.xlu0 %1479
        %v1481 = vsel %vm873, %v1474, 0
        %v1483 = vsel %vm873, %v1476, 0
        %v1485 = vsel %vm873, %v1478, 0
        %v1487 = vsel %vm873, %v1480, 0
        %1489 = vmatprep.subr.mxu0 0.0
        %1490 = vmatpush1.xpose.msra.mxu0 %v1485
        %1491 = vmatprep.subr.mxu0 0.0
        %1492 = vmatpush1.xpose.msra.mxu0 %v1487
        %1493 = vmatprep.subr.mxu0 0.0
        %1494 = vmatpush1.xpose.msra.mxu0 0.0
        %1495 = vmatprep.subr.mxu0 0.0
        %1496 = vmatpush1.xpose.msra.mxu0 0.0
        %1497 = vmatprep.subr.mxu0 0.0
        %1498 = vmatpush1.xpose.msra.mxu0 0.0
        %1499 = vmatprep.subr.mxu0 0.0
        %1500 = vmatpush1.xpose.msra.mxu0 0.0
        %1501 = vmatprep.subr.mxu0 0.0
        %1502 = vmatpush1.xpose.msra.mxu0 0.0
        %1503 = vmatprep.subr.mxu0 0.0
        %1504 = vmatpush1.xpose.msra.mxu0 0.0
        %1505 = vmatprep.subr.mxu0 0.0
        %1506 = vmatpush1.xpose.msra.mxu0 0.0
        %1507 = vmatprep.subr.mxu0 0.0
        %1508 = vmatpush1.xpose.msra.mxu0 0.0
        %1509 = vmatprep.subr.mxu0 0.0
        %1510 = vmatpush1.xpose.msra.mxu0 0.0
        %1511 = vmatprep.subr.mxu0 0.0
        %1512 = vmatpush1.xpose.msra.mxu0 0.0
        %1513 = vmatprep.subr.mxu0 0.0
        %1514 = vmatpush1.xpose.msra.mxu0 0.0
        %1515 = vmatprep.subr.mxu0 0.0
        %1516 = vmatpush1.xpose.msra.mxu0 0.0
        %1517 = vmatprep.subr.mxu0 0.0
        %1518 = vmatpush1.xpose.msra.mxu0 0.0
        %1519 = vmatprep.subr.mxu0 0.0
        %1520 = vmatpush1.xpose.msra.mxu0 0.0
        %1521 = vmatprep.subr.mxu0 0.0
        %1522 = vmatpush1.xpose.msra.mxu0 0.0
        %1523 = vmatprep.subr.mxu0 0.0
        %1524 = vmatpush1.xpose.msra.mxu0 0.0
        %1525 = vmatprep.subr.mxu0 0.0
        %1526 = vmatpush1.xpose.msra.mxu0 0.0
        %1527 = vmatprep.subr.mxu0 0.0
        %1528 = vmatpush1.xpose.msra.mxu0 0.0
        %1529 = vmatprep.subr.mxu0 0.0
        %1530 = vmatpush1.xpose.msra.mxu0 0.0
        %1531 = vmatprep.subr.mxu0 0.0
        %1532 = vmatpush1.xpose.msra.mxu0 0.0
        %1533 = vmatprep.subr.mxu0 0.0
        %1534 = vmatpush1.xpose.msra.mxu0 0.0
        %1535 = vmatprep.subr.mxu0 0.0
        %1536 = vmatpush1.xpose.msra.mxu0 0.0
        %1537 = vmatprep.subr.mxu0 0.0
        %1538 = vmatpush1.xpose.msra.mxu0 0.0
        %1539 = vmatprep.subr.mxu0 0.0
        %1540 = vmatpush1.xpose.msra.mxu0 0.0
        %1541 = vmatprep.subr.mxu0 0.0
        %1542 = vmatpush1.xpose.msra.mxu0 0.0
        %1543 = vmatprep.subr.mxu0 0.0
        %1544 = vmatpush1.xpose.msra.mxu0 0.0
        %1545 = vmatprep.subr.mxu0 0.0
        %1546 = vmatpush1.xpose.msra.mxu0 0.0
        %1547 = vmatprep.subr.mxu0 0.0
        %1548 = vmatpush1.xpose.msra.mxu0 0.0
        %1549 = vmatprep.subr.mxu0 0.0
        %1550 = vmatpush1.xpose.msra.mxu0 0.0
        %1551 = vmatprep.subr.mxu0 0.0
        %1552 = vmatpush1.xpose.msra.mxu0 0.0
        %1553 = vmatprep.mubr.f32.mxu0 0.0
        %1554 = vmatmul.mubr.f32.gmra.mrb[0].mxu0 %v1481
        %v1555 = vpop.f32.mrb[0].mxu0
        %v1556 = vadd.f32 %v867, %v1555
        %v1557 = vpop.f32.mrb[0].mxu0
        %1558 = vmatprep.mubr.f32.mxu0 0.0
        %1559 = vmatmul.mubr.f32.gmra.mrb[0].mxu0 %v1483
        %v1560 = vpop.f32.mrb[0].mxu0
        %v1561 = vadd.f32 %v868, %v1560
        %v1562 = vpop.f32.mrb[0].mxu0
        %1563 = vdwg.mxu0
        %v1564 = vsel %vm961, %v1556, -inf
        %1565 = vmax.xlane.f32.xlu0 %v1564
        %v1566 = vpop.xlane.xlu0 %1565
        %v1567 = vsel %vm961, %v1561, -inf
        %1568 = vmax.xlane.f32.xlu0 %v1567
        %v1569 = vpop.xlane.xlu0 %1568
        %v1570 = vsub.f32 %v1556, %v1566
        %v1571 = vsub.f32 %v1561, %v1569
        %v1572 = vmul.f32 %v1570, 1.442695
        %v1573 = vpow.pop %v1572
        %v1574 = vmul.f32 %v1571, 1.442695
        %v1575 = vpow.pop %v1574
        %v1576 = vsel %vm961, %v1573, 0.0
        %1577 = vadd.xlane.f32.xlu0 %v1576
        %v1578 = vpop.xlane.xlu0 %1577
        %v1579 = vsel %vm961, %v1575, 0.0
        %1580 = vadd.xlane.f32.xlu0 %v1579
        %v1581 = vpop.xlane.xlu0 %1580
        %1582 = vrot.lane.b32.xlu0 %v871, 32
        %v1583 = vpop.permute.xlu0 %1582
        %1584 = vrot.lane.b32.xlu0 %v872, 32
        %v1585 = vpop.permute.xlu0 %1584
        %v1589 = vsel %vm961, %v1573, 0
        %v1592 = vsel %vm961, %v1575, 0
        %1594 = vmatprep.subr.mxu0 0.0
        %1595 = vmatpush1.msra.mxu0 %v1583
        %1596 = vmatprep.subr.mxu0 0.0
        %1597 = vmatpush1.msra.mxu0 %v1585
        %1598 = vmatprep.subr.mxu0 0.0
        %1599 = vmatpush1.msra.mxu0 0.0
        %1600 = vmatprep.subr.mxu0 0.0
        %1601 = vmatpush1.msra.mxu0 0.0
        %1602 = vmatprep.subr.mxu0 0.0
        %1603 = vmatpush1.msra.mxu0 0.0
        %1604 = vmatprep.subr.mxu0 0.0
        %1605 = vmatpush1.msra.mxu0 0.0
        %1606 = vmatprep.subr.mxu0 0.0
        %1607 = vmatpush1.msra.mxu0 0.0
        %1608 = vmatprep.subr.mxu0 0.0
        %1609 = vmatpush1.msra.mxu0 0.0
        %1610 = vmatprep.subr.mxu0 0.0
        %1611 = vmatpush1.msra.mxu0 0.0
        %1612 = vmatprep.subr.mxu0 0.0
        %1613 = vmatpush1.msra.mxu0 0.0
        %1614 = vmatprep.subr.mxu0 0.0
        %1615 = vmatpush1.msra.mxu0 0.0
        %1616 = vmatprep.subr.mxu0 0.0
        %1617 = vmatpush1.msra.mxu0 0.0
        %1618 = vmatprep.subr.mxu0 0.0
        %1619 = vmatpush1.msra.mxu0 0.0
        %1620 = vmatprep.subr.mxu0 0.0
        %1621 = vmatpush1.msra.mxu0 0.0
        %1622 = vmatprep.subr.mxu0 0.0
        %1623 = vmatpush1.msra.mxu0 0.0
        %1624 = vmatprep.subr.mxu0 0.0
        %1625 = vmatpush1.msra.mxu0 0.0
        %1626 = vmatprep.subr.mxu0 0.0
        %1627 = vmatpush1.msra.mxu0 0.0
        %1628 = vmatprep.subr.mxu0 0.0
        %1629 = vmatpush1.msra.mxu0 0.0
        %1630 = vmatprep.subr.mxu0 0.0
        %1631 = vmatpush1.msra.mxu0 0.0
        %1632 = vmatprep.subr.mxu0 0.0
        %1633 = vmatpush1.msra.mxu0 0.0
        %1634 = vmatprep.subr.mxu0 0.0
        %1635 = vmatpush1.msra.mxu0 0.0
        %1636 = vmatprep.subr.mxu0 0.0
        %1637 = vmatpush1.msra.mxu0 0.0
        %1638 = vmatprep.subr.mxu0 0.0
        %1639 = vmatpush1.msra.mxu0 0.0
        %1640 = vmatprep.subr.mxu0 0.0
        %1641 = vmatpush1.msra.mxu0 0.0
        %1642 = vmatprep.subr.mxu0 0.0
        %1643 = vmatpush1.msra.mxu0 0.0
        %1644 = vmatprep.subr.mxu0 0.0
        %1645 = vmatpush1.msra.mxu0 0.0
        %1646 = vmatprep.subr.mxu0 0.0
        %1647 = vmatpush1.msra.mxu0 0.0
        %1648 = vmatprep.subr.mxu0 0.0
        %1649 = vmatpush1.msra.mxu0 0.0
        %1650 = vmatprep.subr.mxu0 0.0
        %1651 = vmatpush1.msra.mxu0 0.0
        %1652 = vmatprep.subr.mxu0 0.0
        %1653 = vmatpush1.msra.mxu0 0.0
        %1654 = vmatprep.subr.mxu0 0.0
        %1655 = vmatpush1.msra.mxu0 0.0
        %1656 = vmatprep.subr.mxu0 0.0
        %1657 = vmatpush1.msra.mxu0 0.0
        %1658 = vmatprep.mubr.f32.mxu0 0.0
        %1659 = vmatmul.mubr.f32.gmra.mrb[0].mxu0 %v1589
        %v1660 = vpop.f32.mrb[0].mxu0
        %v1661 = vadd.f32 0.0, %v1660
        %v1662 = vpop.f32.mrb[0].mxu0
        %1663 = vmatprep.mubr.f32.mxu0 0.0
        %1664 = vmatmul.mubr.f32.gmra.mrb[0].mxu0 %v1592
        %v1665 = vpop.f32.mrb[0].mxu0
        %v1666 = vadd.f32 0.0, %v1665
        %v1667 = vpop.f32.mrb[0].mxu0
        %1668 = vdwg.mxu0
        %v1669 = vrcp.pop %v1578
        %v1670 = vmul.f32 1.0, %v1669
        %v1671 = vrcp.pop %v1581
        %v1672 = vmul.f32 1.0, %v1671
        %v1673 = vmul.f32 %v1661, %v1670
        %v1674 = vmul.f32 %v1666, %v1672
        %1677 = vrot.lane.b32.xlu0 %v1269, 32
        %v1678 = vpop.permute.xlu0 %1677
        %1679 = vrot.lane.b32.xlu0 %v1270, 32
        %v1680 = vpop.permute.xlu0 %1679
        %1685 = vrot.lane.b32.xlu0 %v1471, 64
        %v1686 = vpop.permute.xlu0 %1685
        %1687 = vrot.lane.b32.xlu0 %v1472, 64
        %v1688 = vpop.permute.xlu0 %1687
        %1693 = vrot.lane.b32.xlu0 %v1673, 96
        %v1694 = vpop.permute.xlu0 %1693
        %1695 = vrot.lane.b32.xlu0 %v1674, 96
        %v1696 = vpop.permute.xlu0 %1695
        %v1699 = vsel %vm873, %v1065, %v1678
        %v1700 = vsel %vm873, %v1066, %v1680
        %vm1701 = vcmask 523264
        %v1702 = vsel %vm1701, %v1699, %v1686
        %v1703 = vsel %vm1701, %v1700, %v1688
        %vm1704 = vcmask 785408
        %v1705 = vsel %vm1704, %v1702, %v1694
        %v1706 = vsel %vm1704, %v1703, %v1696
        %s1707 = smul.u32 %s41, 16
        %p1708 = scmp.lt.s32.totalorder %s40, 0
        // Predicated region
        $region97: #{tpu_custom_call.1} parent=67 // pred_check
          %p1709 = pneg %p1708
        $region98: #{tpu_custom_call.1} parent=67 // pred_check_branch
          %1711 = sbr.rel (%p1709) target = $region100
        $region99: #{tpu_custom_call.1} parent=67 // pred_region
          %s1712 = smul.u32 %s40, 16
          %s1713 = sadd.s32 %s1707, %s1712
          %s1714 = scalar_lea.vmem [#allocation4], %s1713
          %1715 = vst [vmem:[%s1714] sm:$0xff] %v1705
          %1716 = vst [vmem:[%s1714 + $0x8] sm:$0xff] %v1706
        $region100: #{tpu_custom_call.1} parent=67 // pred_fallthru
          _
        %p1717 = scmp.eq.s32.totalorder %s40, 0
        // Predicated region
        $region101: #{tpu_custom_call.1} parent=67 // pred_check
          %p1718 = pneg %p1717
        $region102: #{tpu_custom_call.1} parent=67 // pred_check_branch
          %1720 = sbr.rel (%p1718) target = $region104
        $region103: #{tpu_custom_call.1} parent=67 // pred_region
          %v1721 = vld [vmem:[#allocation14] sm:$0xff]
          %v1722 = vld [vmem:[#allocation14 + $0x8] sm:$0xff]
          %v1723 = vld [vmem:[#allocation14 + $0x10] sm:$0xff]
          %v1724 = vld [vmem:[#allocation14 + $0x18] sm:$0xff]
          %v1725 = vld [vmem:[#allocation14 + $0x20] sm:$0xff]
          %v1726 = vld [vmem:[#allocation14 + $0x28] sm:$0xff]
          %v1727 = vld [vmem:[#allocation14 + $0x30] sm:$0xff]
          %v1728 = vld [vmem:[#allocation14 + $0x38] sm:$0xff]
          %v1729 = vld [vmem:[#allocation14 + $0x40] sm:$0xff]
          %v1730 = vld [vmem:[#allocation14 + $0x48] sm:$0xff]
          %v1731 = vld [vmem:[#allocation14 + $0x50] sm:$0xff]
          %v1732 = vld [vmem:[#allocation14 + $0x58] sm:$0xff]
          %v1733 = vld [vmem:[#allocation14 + $0x60] sm:$0xff]
          %v1734 = vld [vmem:[#allocation14 + $0x68] sm:$0xff]
          %v1735 = vld [vmem:[#allocation14 + $0x70] sm:$0xff]
          %v1736 = vld [vmem:[#allocation14 + $0x78] sm:$0xff]
          %v1737 = vld [vmem:[%s9] sm:$0x1]
          %v1739 = vlaneseq
          %v1740 = vshrl.u32 %v1739, 7
          %v1741 = vsub.s32 0, %v1740
          %v1742 = vrot.slane %v1737, %v1741
          %1744 = vmatprep.subr.mxu0 0.0
          %1745 = vmatpush1.msra.mxu0 %v1721
          %1746 = vmatprep.subr.mxu0 0.0
          %1747 = vmatpush1.msra.mxu0 %v1722
          %1748 = vmatprep.subr.mxu0 0.0
          %1749 = vmatpush1.msra.mxu0 %v1723
          %1750 = vmatprep.subr.mxu0 0.0
          %1751 = vmatpush1.msra.mxu0 %v1724
          %1752 = vmatprep.subr.mxu0 0.0
          %1753 = vmatpush1.msra.mxu0 %v1725
          %1754 = vmatprep.subr.mxu0 0.0
          %1755 = vmatpush1.msra.mxu0 %v1726
          %1756 = vmatprep.subr.mxu0 0.0
          %1757 = vmatpush1.msra.mxu0 %v1727
          %1758 = vmatprep.subr.mxu0 0.0
          %1759 = vmatpush1.msra.mxu0 %v1728
          %1760 = vmatprep.subr.mxu0 0.0
          %1761 = vmatpush1.msra.mxu0 %v1729
          %1762 = vmatprep.subr.mxu0 0.0
          %1763 = vmatpush1.msra.mxu0 %v1730
          %1764 = vmatprep.subr.mxu0 0.0
          %1765 = vmatpush1.msra.mxu0 %v1731
          %1766 = vmatprep.subr.mxu0 0.0
          %1767 = vmatpush1.msra.mxu0 %v1732
          %1768 = vmatprep.subr.mxu0 0.0
          %1769 = vmatpush1.msra.mxu0 %v1733
          %1770 = vmatprep.subr.mxu0 0.0
          %1771 = vmatpush1.msra.mxu0 %v1734
          %1772 = vmatprep.subr.mxu0 0.0
          %1773 = vmatpush1.msra.mxu0 %v1735
          %1774 = vmatprep.subr.mxu0 0.0
          %1775 = vmatpush1.msra.mxu0 %v1736
          %1776 = vmatprep.subr.mxu0 0.0
          %1777 = vmatpush1.msra.mxu0 0.0
          %1778 = vmatprep.subr.mxu0 0.0
          %1779 = vmatpush1.msra.mxu0 0.0
          %1780 = vmatprep.subr.mxu0 0.0
          %1781 = vmatpush1.msra.mxu0 0.0
          %1782 = vmatprep.subr.mxu0 0.0
          %1783 = vmatpush1.msra.mxu0 0.0
          %1784 = vmatprep.subr.mxu0 0.0
          %1785 = vmatpush1.msra.mxu0 0.0
          %1786 = vmatprep.subr.mxu0 0.0
          %1787 = vmatpush1.msra.mxu0 0.0
          %1788 = vmatprep.subr.mxu0 0.0
          %1789 = vmatpush1.msra.mxu0 0.0
          %1790 = vmatprep.subr.mxu0 0.0
          %1791 = vmatpush1.msra.mxu0 0.0
          %1792 = vmatprep.subr.mxu0 0.0
          %1793 = vmatpush1.msra.mxu0 0.0
          %1794 = vmatprep.subr.mxu0 0.0
          %1795 = vmatpush1.msra.mxu0 0.0
          %1796 = vmatprep.subr.mxu0 0.0
          %1797 = vmatpush1.msra.mxu0 0.0
          %1798 = vmatprep.subr.mxu0 0.0
          %1799 = vmatpush1.msra.mxu0 0.0
          %1800 = vmatprep.subr.mxu0 0.0
          %1801 = vmatpush1.msra.mxu0 0.0
          %1802 = vmatprep.subr.mxu0 0.0
          %1803 = vmatpush1.msra.mxu0 0.0
          %1804 = vmatprep.subr.mxu0 0.0
          %1805 = vmatpush1.msra.mxu0 0.0
          %1806 = vmatprep.subr.mxu0 0.0
          %1807 = vmatpush1.msra.mxu0 0.0
          %1808 = vmatprep.mubr.f32.mxu0 0.0
          %1809 = vmatmul.mubr.f32.gmra.mrb[0].mxu0 %v1705
          %v1810 = vpop.f32.mrb[0].mxu0
          %v1811 = vadd.f32 %v1742, %v1810
          %v1812 = vpop.f32.mrb[0].mxu0
          %1813 = vmatprep.mubr.f32.mxu0 0.0
          %1814 = vmatmul.mubr.f32.gmra.mrb[0].mxu0 %v1706
          %v1815 = vpop.f32.mrb[0].mxu0
          %v1816 = vadd.f32 %v1742, %v1815
          %v1817 = vpop.f32.mrb[0].mxu0
          %1818 = vdwg.mxu0
          %v1819 = vadd.f32 %v758, %v1811
          %v1820 = vadd.f32 %v759, %v1816
          %1821 = vadd.xlane.f32.xlu0 %v1819
          %v1822 = vpop.xlane.xlu0 %1821
          %1823 = vadd.xlane.f32.xlu0 %v1820
          %v1824 = vpop.xlane.xlu0 %1823
          %v1825 = vrcp.pop 128.0
          %v1826 = vmul.f32 %v1822, %v1825
          %v1827 = vmul.f32 %v1824, %v1825
          %v1828 = vsub.f32 %v1819, %v1826
          %v1829 = vsub.f32 %v1820, %v1827
          %v1830 = vmul.f32 %v1828, %v1828
          %v1831 = vmul.f32 %v1829, %v1829
          %1832 = vadd.xlane.f32.xlu0 %v1830
          %v1833 = vpop.xlane.xlu0 %1832
          %1834 = vadd.xlane.f32.xlu0 %v1831
          %v1835 = vpop.xlane.xlu0 %1834
          %v1836 = vmul.f32 %v1833, %v1825
          %v1837 = vmul.f32 %v1835, %v1825
          %v1838 = vadd.f32 %v1836, 1e-05
          %v1839 = vadd.f32 %v1837, 1e-05
          %v1840 = vrsqrt.pop %v1838
          %v1841 = vrsqrt.pop %v1839
          %v1842 = vmul.f32 %v1828, %v1840
          %v1843 = vmul.f32 %v1829, %v1841
          %v1844 = vld [vmem:[%s10] sm:$0x1]
          %v1846 = vlaneseq
          %v1847 = vshrl.u32 %v1846, 7
          %v1848 = vsub.s32 0, %v1847
          %v1849 = vrot.slane %v1844, %v1848
          %v1851 = vmul.f32 %v1842, %v1849
          %v1852 = vmul.f32 %v1843, %v1849
          %v1853 = vld [vmem:[%s11] sm:$0x1]
          %v1855 = vlaneseq
          %v1856 = vshrl.u32 %v1855, 7
          %v1857 = vsub.s32 0, %v1856
          %v1858 = vrot.slane %v1853, %v1857
          %v1860 = vadd.f32 %v1851, %v1858
          %v1861 = vadd.f32 %v1852, %v1858
          %1862 = vst [vmem:[%s613] sm:$0xff] %v1860
          %1863 = vst [vmem:[%s613 + $0x8] sm:$0xff] %v1861
        $region104: #{tpu_custom_call.1} parent=67 // pred_fallthru
          _
        %s1864 = sand.u32 %s357, 1
        %s1865 = scalar_lea.sflag [#allocation7], %s1864
        %s1866 = sand.u32 %s357, 1
        %s1867 = smul.addr %s1866, 16
        %s1868 = scalar_lea.vmem [#allocation16], %s1867
        // Predicated region
        $region105: #{tpu_custom_call.1} parent=67 // pred_check
          %p1869 = pneg %p367
        $region106: #{tpu_custom_call.1} parent=67 // pred_check_branch
          %1871 = sbr.rel (%p1869) target = $region108
        $region107: #{tpu_custom_call.1} parent=67 // pred_region
          %s1872 = smul.u32 2, %s41
          %s1874 = ssub.s32 256, 256
          %1875 = vsyncadd %s1865, %s1874
          %s1876 = smul.addr %s39, 2
          %s1877 = sadd.s32 %s1872, %s1876
          %s1878 = smul.addr %s1877, 128
          %s1879 = scalar_lea.hbm %s12, %s1878
          %s1880 = sshll.u32 %s1868, 4
          %s1881 = int_to_ptr.vmem [resolvable:$true] %s1880
          %1886 = dma.vmem_to_hbm [thread:$0]  %s1881, 256, %s1879, %s1865, 128, 128, 8
        $region108: #{tpu_custom_call.1} parent=67 // pred_fallthru
          _
      $region68: #{tpu_custom_call.1} parent=5 // pred_fallthru
        _
      %p1887 = scmp.le.s32.totalorder 2, %s29
      // Predicated region
      $region109: #{tpu_custom_call.1} parent=5 // pred_check
        %p1888 = pneg %p1887
      $region110: #{tpu_custom_call.1} parent=5 // pred_check_branch
        %1890 = sbr.rel (%p1888) target = $region112
      $region111: #{tpu_custom_call.1} parent=5 // pred_region
        %s1891 = ssub.s32 %s29, 2
        // Predicated region
        $region113: #{tpu_custom_call.1} parent=111 // pred_check
          %p1892 = pneg %p373
        $region114: #{tpu_custom_call.1} parent=111 // pred_check_branch
          %1894 = sbr.rel (%p1892) target = $region116
        $region115: #{tpu_custom_call.1} parent=111 // pred_region
          %s1895 = sand.u32 %s358, 1
          %s1896 = scalar_lea.sflag [#allocation7], %s1895
          %s1897 = sand.u32 %s358, 1
          %s1898 = smul.addr %s1897, 16
          %s1899 = scalar_lea.vmem [#allocation16], %s1898
          %1900 = dma.done %s1896, 256
        $region116: #{tpu_custom_call.1} parent=111 // pred_fallthru
          _
      $region112: #{tpu_custom_call.1} parent=5 // pred_fallthru
        _
    $region6: #{tpu_custom_call.1} parent=1 // loop_footer
      %s33 = sadd.s32 1, %s29
    $region7: #{tpu_custom_call.1} parent=1 // loop_footer_branch
      %28 = sbr.rel target = $region3
    $region8: #{tpu_custom_call.1} parent=1 // loop_exit
      _
    %1901 = vsyncpa [#allocation6], 1
    %s1902 = scalar_lea.sflag [#allocation6], 1
    %1903 = vsyncpa %s1902, 1
    %1904 = vsyncpa [#allocation9], 1
    %s1905 = scalar_lea.sflag [#allocation9], 1
    %1906 = vsyncpa %s1905, 1
    %1907 = vsyncpa [#allocation12], 1
    %1908 = vsyncpa [#allocation15], 1
    %1909 = vsyncpa [#allocation7], 1
    %s1910 = scalar_lea.sflag [#allocation7], 1
    %1911 = vsyncpa %s1910, 1

</llo_original>
